<compile_context>
chip_gen: v7x
topology: tpu7x:2x2x1
jax: 0.10.0
libtpu: 0.0.40
codegen_flags: <defaults>
</compile_context>

<pallas_src>
import functools
import math

import jax
import jax.numpy as jnp
import numpy as np
from jax.experimental import pallas as pl
from jax.experimental.pallas import tpu as pltpu


def _fused_pure_conv_kernel(x_ref, w_ref, o_ref, *, L, C, K, left, right, n_layers):
    """Fused n_layers x (reflect-pad -> valid conv1d -> optional ReLU), one batch element.

    x_ref: (1, C, L)              input activations (NCL), sequence on lanes
    w_ref: (n_layers, C, C*K+1)   folded weights; last column is the bias
    o_ref: (1, C, L)              output activations (NCL)
    """
    x = x_ref[0].astype(jnp.float32)                                 # (C, L)

    for layer in range(n_layers):
        w_aug = w_ref[layer].astype(jnp.float32)                     # (C, C*K + 1)

        # Reflect pad (PyTorch 'reflect', no edge repeat) along the lane axis.
        pieces = [x[:, j:j + 1] for j in range(left, 0, -1)]         # x[left..1]
        pieces.append(x)                                             # x[0..L-1]
        pieces += [x[:, L - 2 - j:L - 1 - j] for j in range(right)]  # x[L-2..L-1-right]
        x_pad = jnp.concatenate(pieces, axis=-1)                     # (C, L + K - 1)

        # im2col: row (k*C + ci) of `patch` holds x_pad[ci, k : k + L].
        # Static lane slices (small, cheap relayouts) + a ones row for the bias.
        rows = [x_pad[:, k:k + L] for k in range(K)]                 # K x (C, L)
        rows.append(jnp.ones((1, L), jnp.float32))                   # bias row
        patch = jnp.concatenate(rows, axis=0)                        # (C*K + 1, L)

        # Whole layer = one matmul: conv taps + channel mixing + bias in one shot.
        y = jnp.dot(w_aug, patch,
                    preferred_element_type=jnp.float32,
                    precision=jax.lax.Precision.HIGHEST)             # (C, L)
        if layer < n_layers - 1:                                     # ReLU after conv1, conv2
            y = jnp.maximum(y, 0.0)
        x = y

    o_ref[0] = x.astype(o_ref.dtype)


def fold_conv_params(params):
    """Fold each (w: (C, C, K), b: (C,)) into a (C, C*K + 1) matrix (bias = last column).

    Column ordering matches the in-kernel im2col: column (k*C + ci) multiplies
    x_pad[ci, l + k]; the final all-ones patch row picks up the bias.
    """
    mats = []
    for w, b in params:
        C, _, K = w.shape
        w2 = jnp.transpose(w, (0, 2, 1)).reshape(C, C * K)   # [co, k*C + ci] = w[co, ci, k]
        mats.append(jnp.concatenate([w2, b[:, None]], axis=1))
    return jnp.stack(mats)                                   # (n_layers, C, C*K + 1)


def pure_conv_forward(y, params, kernel_size):
    """y: (B, L, C) -> (B, L, C); mirrors PureConv.forward in eval mode."""
    B, L, C = y.shape
    K = kernel_size
    total_padding = K - 1
    left = total_padding // 2
    right = total_padding - left
    n_layers = len(params)

    w_all = fold_conv_params(params)                 # (n_layers, C, C*K + 1)
    x_ncl = jnp.transpose(y, (0, 2, 1))              # NLC -> NCL (tiny boundary op)

    kernel = functools.partial(
        _fused_pure_conv_kernel,
        L=L, C=C, K=K, left=left, right=right, n_layers=n_layers)

    out_ncl = pl.pallas_call(
        kernel,
        out_shape=jax.ShapeDtypeStruct((B, C, L), y.dtype),
        grid_spec=pltpu.PrefetchScalarGridSpec(
            num_scalar_prefetch=0,
            grid=(B,),
            in_specs=[
                pl.BlockSpec((1, C, L), lambda b: (b, 0, 0)),
                pl.BlockSpec((n_layers, C, C * K + 1), lambda b: (0, 0, 0)),
            ],
            out_specs=pl.BlockSpec((1, C, L), lambda b: (b, 0, 0)),
        ),
        compiler_params=pltpu.CompilerParams(
            dimension_semantics=("parallel",),
        ),
    )(x_ncl, w_all)

    return jnp.transpose(out_ncl, (0, 2, 1))         # NCL -> NLC


def init_params(key, channels, kernel_size):
    """Deterministic PyTorch-Conv1d-style init (uniform(-1/sqrt(fan_in), ...))."""
    bound = 1.0 / math.sqrt(channels * kernel_size)
    params = []
    for _ in range(3):
        key, kw, kb = jax.random.split(key, 3)
        w = jax.random.uniform(
            kw, (channels, channels, kernel_size), jnp.float32, -bound, bound)
        b = jax.random.uniform(kb, (channels,), jnp.float32, -bound, bound)
        params.append((w, b))
    return params


def pure_conv_reference(y, params, kernel_size):
    """Plain-JAX reference (lax conv) for correctness checking."""
    total_padding = kernel_size - 1
    left = total_padding // 2
    right = total_padding - left

    def conv(x, w, b, relu):
        xp = jnp.pad(x, ((0, 0), (0, 0), (left, right)), mode="reflect")
        o = jax.lax.conv_general_dilated(
            xp, w, window_strides=(1,), padding="VALID",
            dimension_numbers=("NCH", "OIH", "NCH"),
            precision=jax.lax.Precision.HIGHEST)
        o = o + b[None, :, None]
        return jnp.maximum(o, 0.0) if relu else o

    (w1, b1), (w2, b2), (w3, b3) = params
    x = jnp.transpose(y, (0, 2, 1))
    x = conv(x, w1, b1, True)
    x = conv(x, w2, b2, True)
    x = conv(x, w3, b3, False)
    return jnp.transpose(x, (0, 2, 1))


if __name__ == "__main__":
    # Small shapes consistent with the module: batch=2, seq=128, channels=4, K=8.
    B, L, C, K = 2, 128, 4, 8

    key = jax.random.PRNGKey(0)
    k_in, k_params = jax.random.split(key)
    y = jax.random.normal(k_in, (B, L, C), jnp.float32)
    params = init_params(k_params, C, K)

    fwd = jax.jit(functools.partial(pure_conv_forward, kernel_size=K))
    out = jax.block_until_ready(fwd(y, params))

    ref = pure_conv_reference(y, params, K)
    assert out.shape == (B, L, C)
    np.testing.assert_allclose(np.asarray(out), np.asarray(ref), rtol=1e-4, atol=1e-4)

    print("KERNEL_OK")
</pallas_src>

<mosaic_0001>
module attributes {stable_mosaic.version = 11 : i64} {
  func.func @_fused_pure_conv_kernel(%arg0: i32, %arg1: memref<1x4x128xf32, #tpu.memory_space<vmem>>, %arg2: memref<3x4x33xf32, #tpu.memory_space<vmem>>, %arg3: memref<1x4x128xf32, #tpu.memory_space<vmem>>) attributes {dimension_semantics = [#tpu.dimension_semantics<parallel>], iteration_bounds = array<i64: 2>, scalar_prefetch = 0 : i64, scratch_operands = 0 : i64, tpu.core_type = #tpu.core_type<tc>, window_params = [{transform_indices = @transform_0, window_bounds = array<i64: 1, 4, 128>}, {pipeline_mode = #tpu.pipeline_mode<synchronous>, transform_indices = @transform_1, window_bounds = array<i64: 3, 4, 33>}, {transform_indices = @transform_2, window_bounds = array<i64: 1, 4, 128>}]} {
    %c0 = arith.constant 0 : index
    %c0_0 = arith.constant 0 : index
    %c0_1 = arith.constant 0 : index
    %0 = vector.load %arg1[%c0, %c0_0, %c0_1] : memref<1x4x128xf32, #tpu.memory_space<vmem>>, vector<1x4x128xf32>
    %1 = vector.shape_cast %0 : vector<1x4x128xf32> to vector<4x128xf32>
    %c0_2 = arith.constant 0 : index
    %c0_3 = arith.constant 0 : index
    %c0_4 = arith.constant 0 : index
    %2 = vector.load %arg2[%c0_2, %c0_3, %c0_4] : memref<3x4x33xf32, #tpu.memory_space<vmem>>, vector<1x4x33xf32>
    %3 = vector.shape_cast %2 : vector<1x4x33xf32> to vector<4x33xf32>
    %4 = vector.extract_strided_slice %1 {offsets = [0, 3], sizes = [4, 1], strides = [1, 1]} : vector<4x128xf32> to vector<4x1xf32>
    %5 = vector.extract_strided_slice %1 {offsets = [0, 2], sizes = [4, 1], strides = [1, 1]} : vector<4x128xf32> to vector<4x1xf32>
    %6 = vector.extract_strided_slice %1 {offsets = [0, 1], sizes = [4, 1], strides = [1, 1]} : vector<4x128xf32> to vector<4x1xf32>
    %7 = vector.extract_strided_slice %1 {offsets = [0, 126], sizes = [4, 1], strides = [1, 1]} : vector<4x128xf32> to vector<4x1xf32>
    %8 = vector.extract_strided_slice %1 {offsets = [0, 125], sizes = [4, 1], strides = [1, 1]} : vector<4x128xf32> to vector<4x1xf32>
    %9 = vector.extract_strided_slice %1 {offsets = [0, 124], sizes = [4, 1], strides = [1, 1]} : vector<4x128xf32> to vector<4x1xf32>
    %10 = vector.extract_strided_slice %1 {offsets = [0, 123], sizes = [4, 1], strides = [1, 1]} : vector<4x128xf32> to vector<4x1xf32>
    %11 = tpu.concatenate %4, %5, %6, %1, %7, %8, %9, %10 in 1 : vector<4x1xf32>, vector<4x1xf32>, vector<4x1xf32>, vector<4x128xf32>, vector<4x1xf32>, vector<4x1xf32>, vector<4x1xf32>, vector<4x1xf32> -> vector<4x135xf32>
    %12 = vector.extract_strided_slice %11 {offsets = [0, 0], sizes = [4, 128], strides = [1, 1]} : vector<4x135xf32> to vector<4x128xf32>
    %13 = vector.extract_strided_slice %11 {offsets = [0, 1], sizes = [4, 128], strides = [1, 1]} : vector<4x135xf32> to vector<4x128xf32>
    %14 = vector.extract_strided_slice %11 {offsets = [0, 2], sizes = [4, 128], strides = [1, 1]} : vector<4x135xf32> to vector<4x128xf32>
    %15 = vector.extract_strided_slice %11 {offsets = [0, 3], sizes = [4, 128], strides = [1, 1]} : vector<4x135xf32> to vector<4x128xf32>
    %16 = vector.extract_strided_slice %11 {offsets = [0, 4], sizes = [4, 128], strides = [1, 1]} : vector<4x135xf32> to vector<4x128xf32>
    %17 = vector.extract_strided_slice %11 {offsets = [0, 5], sizes = [4, 128], strides = [1, 1]} : vector<4x135xf32> to vector<4x128xf32>
    %18 = vector.extract_strided_slice %11 {offsets = [0, 6], sizes = [4, 128], strides = [1, 1]} : vector<4x135xf32> to vector<4x128xf32>
    %19 = vector.extract_strided_slice %11 {offsets = [0, 7], sizes = [4, 128], strides = [1, 1]} : vector<4x135xf32> to vector<4x128xf32>
    %cst = arith.constant 1.000000e+00 : f32
    %20 = vector.broadcast %cst : f32 to vector<1x128xf32>
    %21 = tpu.concatenate %12, %13, %14, %15, %16, %17, %18, %19, %20 in 0 : vector<4x128xf32>, vector<4x128xf32>, vector<4x128xf32>, vector<4x128xf32>, vector<4x128xf32>, vector<4x128xf32>, vector<4x128xf32>, vector<4x128xf32>, vector<1x128xf32> -> vector<33x128xf32>
    %cst_5 = arith.constant dense<0.000000e+00> : vector<4x128xf32>
    %22 = tpu.matmul %3, %21, %cst_5 {dimension_numbers = #tpu.dot_dimension_numbers<[1], [0], [0], [1], [0, 0, 1, 1], [], []>, precision = #tpu.contract_precision<fp32>} : vector<4x33xf32>, vector<33x128xf32>, vector<4x128xf32> -> vector<4x128xf32>
    %cst_6 = arith.constant 0.000000e+00 : f32
    %23 = vector.broadcast %cst_6 : f32 to vector<4x128xf32>
    %24 = arith.maximumf %22, %23 : vector<4x128xf32>
    %c1 = arith.constant 1 : index
    %c0_7 = arith.constant 0 : index
    %c0_8 = arith.constant 0 : index
    %25 = vector.load %arg2[%c1, %c0_7, %c0_8] : memref<3x4x33xf32, #tpu.memory_space<vmem>>, vector<1x4x33xf32>
    %26 = vector.shape_cast %25 : vector<1x4x33xf32> to vector<4x33xf32>
    %27 = vector.extract_strided_slice %24 {offsets = [0, 3], sizes = [4, 1], strides = [1, 1]} : vector<4x128xf32> to vector<4x1xf32>
    %28 = vector.extract_strided_slice %24 {offsets = [0, 2], sizes = [4, 1], strides = [1, 1]} : vector<4x128xf32> to vector<4x1xf32>
    %29 = vector.extract_strided_slice %24 {offsets = [0, 1], sizes = [4, 1], strides = [1, 1]} : vector<4x128xf32> to vector<4x1xf32>
    %30 = vector.extract_strided_slice %24 {offsets = [0, 126], sizes = [4, 1], strides = [1, 1]} : vector<4x128xf32> to vector<4x1xf32>
    %31 = vector.extract_strided_slice %24 {offsets = [0, 125], sizes = [4, 1], strides = [1, 1]} : vector<4x128xf32> to vector<4x1xf32>
    %32 = vector.extract_strided_slice %24 {offsets = [0, 124], sizes = [4, 1], strides = [1, 1]} : vector<4x128xf32> to vector<4x1xf32>
    %33 = vector.extract_strided_slice %24 {offsets = [0, 123], sizes = [4, 1], strides = [1, 1]} : vector<4x128xf32> to vector<4x1xf32>
    %34 = tpu.concatenate %27, %28, %29, %24, %30, %31, %32, %33 in 1 : vector<4x1xf32>, vector<4x1xf32>, vector<4x1xf32>, vector<4x128xf32>, vector<4x1xf32>, vector<4x1xf32>, vector<4x1xf32>, vector<4x1xf32> -> vector<4x135xf32>
    %35 = vector.extract_strided_slice %34 {offsets = [0, 0], sizes = [4, 128], strides = [1, 1]} : vector<4x135xf32> to vector<4x128xf32>
    %36 = vector.extract_strided_slice %34 {offsets = [0, 1], sizes = [4, 128], strides = [1, 1]} : vector<4x135xf32> to vector<4x128xf32>
    %37 = vector.extract_strided_slice %34 {offsets = [0, 2], sizes = [4, 128], strides = [1, 1]} : vector<4x135xf32> to vector<4x128xf32>
    %38 = vector.extract_strided_slice %34 {offsets = [0, 3], sizes = [4, 128], strides = [1, 1]} : vector<4x135xf32> to vector<4x128xf32>
    %39 = vector.extract_strided_slice %34 {offsets = [0, 4], sizes = [4, 128], strides = [1, 1]} : vector<4x135xf32> to vector<4x128xf32>
    %40 = vector.extract_strided_slice %34 {offsets = [0, 5], sizes = [4, 128], strides = [1, 1]} : vector<4x135xf32> to vector<4x128xf32>
    %41 = vector.extract_strided_slice %34 {offsets = [0, 6], sizes = [4, 128], strides = [1, 1]} : vector<4x135xf32> to vector<4x128xf32>
    %42 = vector.extract_strided_slice %34 {offsets = [0, 7], sizes = [4, 128], strides = [1, 1]} : vector<4x135xf32> to vector<4x128xf32>
    %cst_9 = arith.constant 1.000000e+00 : f32
    %43 = vector.broadcast %cst_9 : f32 to vector<1x128xf32>
    %44 = tpu.concatenate %35, %36, %37, %38, %39, %40, %41, %42, %43 in 0 : vector<4x128xf32>, vector<4x128xf32>, vector<4x128xf32>, vector<4x128xf32>, vector<4x128xf32>, vector<4x128xf32>, vector<4x128xf32>, vector<4x128xf32>, vector<1x128xf32> -> vector<33x128xf32>
    %cst_10 = arith.constant dense<0.000000e+00> : vector<4x128xf32>
    %45 = tpu.matmul %26, %44, %cst_10 {dimension_numbers = #tpu.dot_dimension_numbers<[1], [0], [0], [1], [0, 0, 1, 1], [], []>, precision = #tpu.contract_precision<fp32>} : vector<4x33xf32>, vector<33x128xf32>, vector<4x128xf32> -> vector<4x128xf32>
    %cst_11 = arith.constant 0.000000e+00 : f32
    %46 = vector.broadcast %cst_11 : f32 to vector<4x128xf32>
    %47 = arith.maximumf %45, %46 : vector<4x128xf32>
    %c2 = arith.constant 2 : index
    %c0_12 = arith.constant 0 : index
    %c0_13 = arith.constant 0 : index
    %48 = vector.load %arg2[%c2, %c0_12, %c0_13] : memref<3x4x33xf32, #tpu.memory_space<vmem>>, vector<1x4x33xf32>
    %49 = vector.shape_cast %48 : vector<1x4x33xf32> to vector<4x33xf32>
    %50 = vector.extract_strided_slice %47 {offsets = [0, 3], sizes = [4, 1], strides = [1, 1]} : vector<4x128xf32> to vector<4x1xf32>
    %51 = vector.extract_strided_slice %47 {offsets = [0, 2], sizes = [4, 1], strides = [1, 1]} : vector<4x128xf32> to vector<4x1xf32>
    %52 = vector.extract_strided_slice %47 {offsets = [0, 1], sizes = [4, 1], strides = [1, 1]} : vector<4x128xf32> to vector<4x1xf32>
    %53 = vector.extract_strided_slice %47 {offsets = [0, 126], sizes = [4, 1], strides = [1, 1]} : vector<4x128xf32> to vector<4x1xf32>
    %54 = vector.extract_strided_slice %47 {offsets = [0, 125], sizes = [4, 1], strides = [1, 1]} : vector<4x128xf32> to vector<4x1xf32>
    %55 = vector.extract_strided_slice %47 {offsets = [0, 124], sizes = [4, 1], strides = [1, 1]} : vector<4x128xf32> to vector<4x1xf32>
    %56 = vector.extract_strided_slice %47 {offsets = [0, 123], sizes = [4, 1], strides = [1, 1]} : vector<4x128xf32> to vector<4x1xf32>
    %57 = tpu.concatenate %50, %51, %52, %47, %53, %54, %55, %56 in 1 : vector<4x1xf32>, vector<4x1xf32>, vector<4x1xf32>, vector<4x128xf32>, vector<4x1xf32>, vector<4x1xf32>, vector<4x1xf32>, vector<4x1xf32> -> vector<4x135xf32>
    %58 = vector.extract_strided_slice %57 {offsets = [0, 0], sizes = [4, 128], strides = [1, 1]} : vector<4x135xf32> to vector<4x128xf32>
    %59 = vector.extract_strided_slice %57 {offsets = [0, 1], sizes = [4, 128], strides = [1, 1]} : vector<4x135xf32> to vector<4x128xf32>
    %60 = vector.extract_strided_slice %57 {offsets = [0, 2], sizes = [4, 128], strides = [1, 1]} : vector<4x135xf32> to vector<4x128xf32>
    %61 = vector.extract_strided_slice %57 {offsets = [0, 3], sizes = [4, 128], strides = [1, 1]} : vector<4x135xf32> to vector<4x128xf32>
    %62 = vector.extract_strided_slice %57 {offsets = [0, 4], sizes = [4, 128], strides = [1, 1]} : vector<4x135xf32> to vector<4x128xf32>
    %63 = vector.extract_strided_slice %57 {offsets = [0, 5], sizes = [4, 128], strides = [1, 1]} : vector<4x135xf32> to vector<4x128xf32>
    %64 = vector.extract_strided_slice %57 {offsets = [0, 6], sizes = [4, 128], strides = [1, 1]} : vector<4x135xf32> to vector<4x128xf32>
    %65 = vector.extract_strided_slice %57 {offsets = [0, 7], sizes = [4, 128], strides = [1, 1]} : vector<4x135xf32> to vector<4x128xf32>
    %cst_14 = arith.constant 1.000000e+00 : f32
    %66 = vector.broadcast %cst_14 : f32 to vector<1x128xf32>
    %67 = tpu.concatenate %58, %59, %60, %61, %62, %63, %64, %65, %66 in 0 : vector<4x128xf32>, vector<4x128xf32>, vector<4x128xf32>, vector<4x128xf32>, vector<4x128xf32>, vector<4x128xf32>, vector<4x128xf32>, vector<4x128xf32>, vector<1x128xf32> -> vector<33x128xf32>
    %cst_15 = arith.constant dense<0.000000e+00> : vector<4x128xf32>
    %68 = tpu.matmul %49, %67, %cst_15 {dimension_numbers = #tpu.dot_dimension_numbers<[1], [0], [0], [1], [0, 0, 1, 1], [], []>, precision = #tpu.contract_precision<fp32>} : vector<4x33xf32>, vector<33x128xf32>, vector<4x128xf32> -> vector<4x128xf32>
    %c0_16 = arith.constant 0 : index
    %c0_17 = arith.constant 0 : index
    %c0_18 = arith.constant 0 : index
    %69 = vector.load %arg3[%c0_16, %c0_17, %c0_18] : memref<1x4x128xf32, #tpu.memory_space<vmem>>, vector<1x4x128xf32>
    %70 = vector.shape_cast %69 : vector<1x4x128xf32> to vector<4x128xf32>
    %71 = vector.shape_cast %68 : vector<4x128xf32> to vector<1x4x128xf32>
    tpu.vector_store %arg3[%c0_16, %c0_17, %c0_18], %71 {strides = array<i32>} : memref<1x4x128xf32, #tpu.memory_space<vmem>>, vector<1x4x128xf32>,
    return
  }
  func.func @transform_0(%arg0: i32) -> (i32, i32, i32) {
    %c0_i32 = arith.constant 0 : i32
    %c0_i32_0 = arith.constant 0 : i32
    %c0_i32_1 = arith.constant 0 : i32
    return %arg0, %c0_i32, %c0_i32_0 : i32, i32, i32
  }
  func.func @transform_1(%arg0: i32) -> (i32, i32, i32) {
    %c0_i32 = arith.constant 0 : i32
    %c0_i32_0 = arith.constant 0 : i32
    %c0_i32_1 = arith.constant 0 : i32
    %c0_i32_2 = arith.constant 0 : i32
    return %c0_i32, %c0_i32_0, %c0_i32_1 : i32, i32, i32
  }
  func.func @transform_2(%arg0: i32) -> (i32, i32, i32) {
    %c0_i32 = arith.constant 0 : i32
    %c0_i32_0 = arith.constant 0 : i32
    %c0_i32_1 = arith.constant 0 : i32
    return %arg0, %c0_i32, %c0_i32_0 : i32, i32, i32
  }
}

</mosaic_0001>

<llo_original>
// kernel: pure_conv_forward.1
$region0: #{pure_conv_forward.1}
  #allocation0 [shape = 'u32[]', space=smem, size = 0x4, offset = 0x4, fixed_abs, tag = 'smem constant byte address 0x4 - core index']
  #allocation1 [shape = 'u32[144,128]{1,0:T(1,128)}', space=vmem, size = 0x12000, scoped, tag = 'internal scratch']
  %s0 = inlined_call_operand.vmem [shape: f32[2,4,128], index: 0, kind: input, shape index: {}]
  %s1 = inlined_call_operand.vmem [shape: f32[3,4,33], index: 1, kind: input, shape index: {}]
  %s2 = inlined_call_operand.hbm [shape: f32[2,4,128], index: 2, kind: output, shape index: {}]
  %s3 = sld [smem:[#allocation0]]
  $region41: #{pure_conv_forward.1} parent=0
    _
  %s5 = ssub.s32 1, %s3
  %s6 = scalar_select 0, %s5, %s3
  $region1: #{pure_conv_forward.1} parent=0
    #allocation2 [shape = 'u8[4096]{0}', space=vmem, size = 0x1000, scoped, tag = 'output window, operand 0']
    #allocation3 [shape = 's32[2]{0}', space=sflag, size = 0x8, scoped, tag = 'scoped memory for pure_conv_forward.1']
    %7 = vsyncpa [#allocation3], 0
    %s8 = scalar_lea.sflag [#allocation3], 1
    %9 = vsyncpa %s8, 0
    loop: start=0, step=1, limit=4
    $region2: #{pure_conv_forward.1} parent=1 // loop_pre_header
      _
    $region3: #{pure_conv_forward.1} parent=1 // loop_header
      %s11 = sphi 0, %s15
      %p12 = scmp.ge.s32.totalorder %s11, 4
      %s21 = sphi 0, %s23
      %s24 = sphi 0, %s21
      %s25 = sphi 0, %s24
      %s41 = sphi 0, %s25
      %s45 = sphi 0, %s45
      %s47 = sphi 0, %s45
      %s48 = sphi 0, %s47
      %s62 = sphi 0, %s48
      %s68 = sphi 0, %s70
      %s71 = sphi 0, %s68
      %s72 = sphi 0, %s71
      %s88 = sphi 0, %s72
    $region4: #{pure_conv_forward.1} parent=1 // loop_header_branch
      %14 = sbr.rel (%p12) target = $region8
    $region5: #{pure_conv_forward.1} parent=1 // loop_body
      %s16 = ssub.s32 %s11, 1
      %s17 = ssub.s32 %s11, 2
      %s18 = sadd.s32 %s11, 1
      %s19 = ssub.s32 %s11, %s18
      %p20 = scmp.eq.s32.totalorder %s19, 0
      %s22 = sadd.s32 %s21, 1
      %s23 = scalar_select %p20, %s21, %s22
      %p26 = pneg %p20
      %p27 = scmp.eq.s32.totalorder %s11, 1
      %p28 = por %p26, %p27
      %p29 = scmp.ne.s32.totalorder %s21, %s24
      %p30 = scmp.eq.s32.totalorder %s11, 0
      %p31 = por %p29, %p30
      %p32 = scmp.ne.s32.totalorder %s21, %s24
      %p33 = scmp.eq.s32.totalorder %s16, 1
      %p34 = por %p32, %p33
      %p35 = scmp.ne.s32.totalorder %s24, %s25
      %p36 = scmp.eq.s32.totalorder %s16, 0
      %p37 = por %p35, %p36
      %p38 = scmp.ne.s32.totalorder %s24, %s25
      %p39 = scmp.eq.s32.totalorder %s17, 1
      %p40 = por %p38, %p39
      %p42 = scmp.ne.s32.totalorder %s25, %s41
      %p43 = scmp.eq.s32.totalorder %s17, 0
      %p44 = por %p42, %p43
      %s46 = sadd.s32 %s45, 1
      %p49 = scmp.eq.s32.totalorder %s11, 1
      %p50 = scmp.ne.s32.totalorder %s45, %s47
      %p51 = scmp.eq.s32.totalorder %s11, 0
      %p52 = por %p50, %p51
      %p53 = scmp.ne.s32.totalorder %s45, %s47
      %p54 = scmp.eq.s32.totalorder %s16, 1
      %p55 = por %p53, %p54
      %p56 = scmp.ne.s32.totalorder %s47, %s48
      %p57 = scmp.eq.s32.totalorder %s16, 0
      %p58 = por %p56, %p57
      %p59 = scmp.ne.s32.totalorder %s47, %s48
      %p60 = scmp.eq.s32.totalorder %s17, 1
      %p61 = por %p59, %p60
      %p63 = scmp.ne.s32.totalorder %s48, %s62
      %p64 = scmp.eq.s32.totalorder %s17, 0
      %p65 = por %p63, %p64
      %s66 = ssub.s32 %s11, %s18
      %p67 = scmp.eq.s32.totalorder %s66, 0
      %s69 = sadd.s32 %s68, 1
      %s70 = scalar_select %p67, %s68, %s69
      %p73 = pneg %p67
      %p74 = scmp.eq.s32.totalorder %s11, 1
      %p75 = por %p73, %p74
      %p76 = scmp.ne.s32.totalorder %s68, %s71
      %p77 = scmp.eq.s32.totalorder %s11, 0
      %p78 = por %p76, %p77
      %p79 = scmp.ne.s32.totalorder %s68, %s71
      %p80 = scmp.eq.s32.totalorder %s16, 1
      %p81 = por %p79, %p80
      %p82 = scmp.ne.s32.totalorder %s71, %s72
      %p83 = scmp.eq.s32.totalorder %s16, 0
      %p84 = por %p82, %p83
      %p85 = scmp.ne.s32.totalorder %s71, %s72
      %p86 = scmp.eq.s32.totalorder %s17, 1
      %p87 = por %p85, %p86
      %p89 = scmp.ne.s32.totalorder %s72, %s88
      %p90 = scmp.eq.s32.totalorder %s17, 0
      %p91 = por %p89, %p90
      %p92 = scmp.le.s32.totalorder 1, %s11
      %p93 = scmp.lt.s32.totalorder %s11, 3
      %p94 = pnand %p92, %p93
      %p95 = pneg %p94
      // Predicated region
      $region9: #{pure_conv_forward.1} parent=5 // pred_check
        _
      $region10: #{pure_conv_forward.1} parent=5 // pred_check_branch
        %97 = sbr.rel (%p94) target = $region12
      $region11: #{pure_conv_forward.1} parent=5 // pred_region
        %s98 = ssub.s32 %s11, 1
        // Predicated region
        $region13: #{pure_conv_forward.1} parent=11 // pred_check
          %p99 = pneg %p58
        $region14: #{pure_conv_forward.1} parent=11 // pred_check_branch
          %101 = sbr.rel (%p99) target = $region16
        $region15: #{pure_conv_forward.1} parent=11 // pred_region
          _
        $region16: #{pure_conv_forward.1} parent=11 // pred_fallthru
          _
      $region12: #{pure_conv_forward.1} parent=5 // pred_fallthru
        _
      %p102 = scmp.lt.s32.totalorder %s11, 2
      // Predicated region
      $region17: #{pure_conv_forward.1} parent=5 // pred_check
        %p103 = pneg %p102
      $region18: #{pure_conv_forward.1} parent=5 // pred_check_branch
        %105 = sbr.rel (%p103) target = $region20
      $region19: #{pure_conv_forward.1} parent=5 // pred_region
        // Predicated region
        $region21: #{pure_conv_forward.1} parent=19 // pred_check
          %p106 = pneg %p31
        $region22: #{pure_conv_forward.1} parent=19 // pred_check_branch
          %108 = sbr.rel (%p106) target = $region24
        $region23: #{pure_conv_forward.1} parent=19 // pred_region
          %p109 = scmp.lt.s32.totalorder %s11, 1
          %s110 = scalar_select %p109, %s11, 1
          %s111 = smul.addr %s110, 4
          %s112 = scalar_lea.vmem %s0, %s111
        $region24: #{pure_conv_forward.1} parent=19 // pred_fallthru
          _
      $region20: #{pure_conv_forward.1} parent=5 // pred_fallthru
        _
      %p113 = scmp.le.s32.totalorder 1, %s11
      %p114 = scmp.lt.s32.totalorder %s11, 3
      %p115 = pnand %p113, %p114
      %p116 = pneg %p115
      // Predicated region
      $region25: #{pure_conv_forward.1} parent=5 // pred_check
        _
      $region26: #{pure_conv_forward.1} parent=5 // pred_check_branch
        %118 = sbr.rel (%p115) target = $region28
      $region27: #{pure_conv_forward.1} parent=5 // pred_region
        %s119 = ssub.s32 %s11, 1
        %p120 = scmp.lt.s32.totalorder %s16, 1
        %s121 = scalar_select %p120, %s16, 1
        %s122 = smul.addr %s121, 4
        %s123 = scalar_lea.vmem %s0, %s122
        %p124 = pneg %p37
        %p125 = pneg %p34
        %p126 = pneg %p58
        %p127 = pneg %p55
        %p128 = pneg %p84
        %p129 = pneg %p81
        %s130 = sand.u32 %s71, 1
        %s131 = scalar_lea.sflag [#allocation3], %s130
        %s132 = sand.u32 %s71, 1
        %s133 = smul.addr %s132, 4
        %s134 = scalar_lea.vmem [#allocation2], %s133
        %p135 = scmp.lt.s32.totalorder %s16, 1
        %s136 = scalar_select %p135, %s16, 1
        %s137 = smul.addr %s136, 4
        %s138 = scalar_lea.vmem %s0, %s137
        %v139 = vld [vmem:[%s138] sm:$0xf]
        %v140 = vld [vmem:[%s1] sm:$0xf]
        %142 = vrot.lane.b32.xlu0 %v139, 125
        %v143 = vpop.permute.xlu0 %142
        %145 = vrot.lane.b32.xlu0 %v139, 127
        %v146 = vpop.permute.xlu0 %145
        %148 = vrot.lane.b32.xlu0 %v139, 1
        %v149 = vpop.permute.xlu0 %148
        %151 = vrot.lane.b32.xlu0 %v139, 3
        %v152 = vpop.permute.xlu0 %151
        %154 = vrot.lane.b32.xlu0 %v139, 5
        %v155 = vpop.permute.xlu0 %154
        %157 = vrot.lane.b32.xlu0 %v139, 7
        %v158 = vpop.permute.xlu0 %157
        %160 = vrot.lane.b32.xlu0 %v139, 9
        %v161 = vpop.permute.xlu0 %160
        %163 = vrot.lane.b32.xlu0 %v139, 11
        %v164 = vpop.permute.xlu0 %163
        %vm166 = vcmask 7168
        %v167 = vsel %vm166, %v143, %v146
        %vm168 = vcmask 15360
        %v169 = vsel %vm168, %v167, %v149
        %vm170 = vcmask 23552
        %v171 = vsel %vm170, %v169, %v152
        %v172 = vsel %vm170, %v152, %v155
        %vm173 = vcmask 31744
        %v174 = vsel %vm173, %v172, %v158
        %vm175 = vcmask 39936
        %v176 = vsel %vm175, %v174, %v161
        %vm177 = vcmask 48128
        %v178 = vsel %vm177, %v176, %v164
        %v181 = vrot.slane %v171, 4
        %v182 = vrot.slane %v178, 4
        %183 = vrot.lane.b32.xlu0 %v181, 127
        %v184 = vpop.permute.xlu0 %183
        %185 = vrot.lane.b32.xlu0 %v182, 127
        %v186 = vpop.permute.xlu0 %185
        %vm187 = vcmask 1039360
        %v188 = vsel %vm187, %v184, %v186
        %190 = vrot.lane.b32.xlu0 %v171, 126
        %v191 = vpop.permute.xlu0 %190
        %192 = vrot.lane.b32.xlu0 %v178, 126
        %v193 = vpop.permute.xlu0 %192
        %vm194 = vcmask 1031168
        %v195 = vsel %vm194, %v191, %v193
        %197 = vrot.lane.b32.xlu0 %v181, 125
        %v198 = vpop.permute.xlu0 %197
        %199 = vrot.lane.b32.xlu0 %v182, 125
        %v200 = vpop.permute.xlu0 %199
        %vm201 = vcmask 1022976
        %v202 = vsel %vm201, %v198, %v200
        %204 = vrot.lane.b32.xlu0 %v171, 124
        %v205 = vpop.permute.xlu0 %204
        %206 = vrot.lane.b32.xlu0 %v178, 124
        %v207 = vpop.permute.xlu0 %206
        %vm208 = vcmask 1014784
        %v209 = vsel %vm208, %v205, %v207
        %211 = vrot.lane.b32.xlu0 %v181, 123
        %v212 = vpop.permute.xlu0 %211
        %213 = vrot.lane.b32.xlu0 %v182, 123
        %v214 = vpop.permute.xlu0 %213
        %vm215 = vcmask 1006592
        %v216 = vsel %vm215, %v212, %v214
        %218 = vrot.lane.b32.xlu0 %v171, 122
        %v219 = vpop.permute.xlu0 %218
        %220 = vrot.lane.b32.xlu0 %v178, 122
        %v221 = vpop.permute.xlu0 %220
        %vm222 = vcmask 998400
        %v223 = vsel %vm222, %v219, %v221
        %225 = vrot.lane.b32.xlu0 %v181, 121
        %v226 = vpop.permute.xlu0 %225
        %227 = vrot.lane.b32.xlu0 %v182, 121
        %v228 = vpop.permute.xlu0 %227
        %vm229 = vcmask 990208
        %v230 = vsel %vm229, %v226, %v228
        %vm232 = vcmask 1043456
        %v233 = vsel %vm232, %v171, %v188
        %v234 = vsel %vm232, %v195, %v202
        %v235 = vsel %vm232, %v209, %v216
        %v236 = vsel %vm232, %v223, %v230
        %vm237 = vcmask 269312
        %v239 = vsel %vm237, %v140, 0
        %vm241 = vcmask 1040384
        %v243 = vsel %vm241, 1.0, 0
        %245 = vmatprep.subr.mxu0 0.0
        %v246 = vand.u32 %v233, 4294901760
        %247 = vmatpush1.msra.mxu0 %v246
        %248 = vmatprep.subr.mxu0 0.0
        %v249 = vand.u32 %v234, 4294901760
        %250 = vmatpush1.msra.mxu0 %v249
        %251 = vmatprep.subr.mxu0 0.0
        %v252 = vand.u32 %v235, 4294901760
        %253 = vmatpush1.msra.mxu0 %v252
        %254 = vmatprep.subr.mxu0 0.0
        %v255 = vand.u32 %v236, 4294901760
        %256 = vmatpush1.msra.mxu0 %v255
        %257 = vmatprep.subr.mxu0 0.0
        %v258 = vand.u32 %v243, 4294901760
        %259 = vmatpush1.msra.mxu0 %v258
        %260 = vmatprep.subr.mxu0 0.0
        %261 = vmatpush1.msra.mxu0 0.0
        %262 = vmatprep.subr.mxu0 0.0
        %263 = vmatpush1.msra.mxu0 0.0
        %264 = vmatprep.subr.mxu0 0.0
        %265 = vmatpush1.msra.mxu0 0.0
        %266 = vmatprep.subr.mxu0 0.0
        %267 = vmatpush1.msra.mxu0 0.0
        %268 = vmatprep.subr.mxu0 0.0
        %269 = vmatpush1.msra.mxu0 0.0
        %270 = vmatprep.subr.mxu0 0.0
        %271 = vmatpush1.msra.mxu0 0.0
        %272 = vmatprep.subr.mxu0 0.0
        %273 = vmatpush1.msra.mxu0 0.0
        %274 = vmatprep.subr.mxu0 0.0
        %275 = vmatpush1.msra.mxu0 0.0
        %276 = vmatprep.subr.mxu0 0.0
        %277 = vmatpush1.msra.mxu0 0.0
        %278 = vmatprep.subr.mxu0 0.0
        %279 = vmatpush1.msra.mxu0 0.0
        %280 = vmatprep.subr.mxu0 0.0
        %281 = vmatpush1.msra.mxu0 0.0
        %282 = vmatprep.subr.mxu0 0.0
        %283 = vmatpush1.msra.mxu0 0.0
        %284 = vmatprep.subr.mxu0 0.0
        %285 = vmatpush1.msra.mxu0 0.0
        %286 = vmatprep.subr.mxu0 0.0
        %287 = vmatpush1.msra.mxu0 0.0
        %288 = vmatprep.subr.mxu0 0.0
        %289 = vmatpush1.msra.mxu0 0.0
        %290 = vmatprep.subr.mxu0 0.0
        %291 = vmatpush1.msra.mxu0 0.0
        %292 = vmatprep.subr.mxu0 0.0
        %293 = vmatpush1.msra.mxu0 0.0
        %294 = vmatprep.subr.mxu0 0.0
        %295 = vmatpush1.msra.mxu0 0.0
        %296 = vmatprep.subr.mxu0 0.0
        %297 = vmatpush1.msra.mxu0 0.0
        %298 = vmatprep.subr.mxu0 0.0
        %299 = vmatpush1.msra.mxu0 0.0
        %300 = vmatprep.subr.mxu0 0.0
        %301 = vmatpush1.msra.mxu0 0.0
        %302 = vmatprep.subr.mxu0 0.0
        %303 = vmatpush1.msra.mxu0 0.0
        %304 = vmatprep.subr.mxu0 0.0
        %305 = vmatpush1.msra.mxu0 0.0
        %306 = vmatprep.subr.mxu0 0.0
        %307 = vmatpush1.msra.mxu0 0.0
        %308 = vmatprep.subr.mxu0 0.0
        %309 = vmatpush1.msra.mxu0 0.0
        %310 = vmatprep.subr.mxu0 0.0
        %311 = vmatpush1.msra.mxu0 0.0
        %312 = vmatprep.subr.mxu0 0.0
        %313 = vmatpush1.msra.mxu0 0.0
        %314 = vmatprep.mubr.f32.mxu0 0.0
        %v315 = vand.u32 %v239, 4294901760
        %v316 = vsub.f32 %v239, %v315
        %v317 = vand.u32 %v316, 4294901760
        %v318 = vsub.f32 %v316, %v317
        %v319 = vand.u32 %v318, 4294901760
        %320 = vmatmul.mubr.f32.gmra.mrb[0].mxu0 %v319
        %v321 = vpop.f32.mrb[0].mxu0
        %v322 = vadd.f32 0.0, %v321
        %v323 = vpop.f32.mrb[0].mxu0
        %324 = vdwg.mxu0
        %325 = vmatprep.subr.mxu0 0.0
        %v326 = vand.u32 %v233, 4294901760
        %v327 = vsub.f32 %v233, %v326
        %v328 = vand.u32 %v327, 4294901760
        %v329 = vsub.f32 %v327, %v328
        %v330 = vand.u32 %v329, 4294901760
        %331 = vmatpush1.msra.mxu0 %v330
        %332 = vmatprep.subr.mxu0 0.0
        %v333 = vand.u32 %v234, 4294901760
        %v334 = vsub.f32 %v234, %v333
        %v335 = vand.u32 %v334, 4294901760
        %v336 = vsub.f32 %v334, %v335
        %v337 = vand.u32 %v336, 4294901760
        %338 = vmatpush1.msra.mxu0 %v337
        %339 = vmatprep.subr.mxu0 0.0
        %v340 = vand.u32 %v235, 4294901760
        %v341 = vsub.f32 %v235, %v340
        %v342 = vand.u32 %v341, 4294901760
        %v343 = vsub.f32 %v341, %v342
        %v344 = vand.u32 %v343, 4294901760
        %345 = vmatpush1.msra.mxu0 %v344
        %346 = vmatprep.subr.mxu0 0.0
        %v347 = vand.u32 %v236, 4294901760
        %v348 = vsub.f32 %v236, %v347
        %v349 = vand.u32 %v348, 4294901760
        %v350 = vsub.f32 %v348, %v349
        %v351 = vand.u32 %v350, 4294901760
        %352 = vmatpush1.msra.mxu0 %v351
        %353 = vmatprep.subr.mxu0 0.0
        %v354 = vand.u32 %v243, 4294901760
        %v355 = vsub.f32 %v243, %v354
        %v356 = vand.u32 %v355, 4294901760
        %v357 = vsub.f32 %v355, %v356
        %v358 = vand.u32 %v357, 4294901760
        %359 = vmatpush1.msra.mxu0 %v358
        %360 = vmatprep.subr.mxu0 0.0
        %361 = vmatpush1.msra.mxu0 0.0
        %362 = vmatprep.subr.mxu0 0.0
        %363 = vmatpush1.msra.mxu0 0.0
        %364 = vmatprep.subr.mxu0 0.0
        %365 = vmatpush1.msra.mxu0 0.0
        %366 = vmatprep.subr.mxu0 0.0
        %367 = vmatpush1.msra.mxu0 0.0
        %368 = vmatprep.subr.mxu0 0.0
        %369 = vmatpush1.msra.mxu0 0.0
        %370 = vmatprep.subr.mxu0 0.0
        %371 = vmatpush1.msra.mxu0 0.0
        %372 = vmatprep.subr.mxu0 0.0
        %373 = vmatpush1.msra.mxu0 0.0
        %374 = vmatprep.subr.mxu0 0.0
        %375 = vmatpush1.msra.mxu0 0.0
        %376 = vmatprep.subr.mxu0 0.0
        %377 = vmatpush1.msra.mxu0 0.0
        %378 = vmatprep.subr.mxu0 0.0
        %379 = vmatpush1.msra.mxu0 0.0
        %380 = vmatprep.subr.mxu0 0.0
        %381 = vmatpush1.msra.mxu0 0.0
        %382 = vmatprep.subr.mxu0 0.0
        %383 = vmatpush1.msra.mxu0 0.0
        %384 = vmatprep.subr.mxu0 0.0
        %385 = vmatpush1.msra.mxu0 0.0
        %386 = vmatprep.subr.mxu0 0.0
        %387 = vmatpush1.msra.mxu0 0.0
        %388 = vmatprep.subr.mxu0 0.0
        %389 = vmatpush1.msra.mxu0 0.0
        %390 = vmatprep.subr.mxu0 0.0
        %391 = vmatpush1.msra.mxu0 0.0
        %392 = vmatprep.subr.mxu0 0.0
        %393 = vmatpush1.msra.mxu0 0.0
        %394 = vmatprep.subr.mxu0 0.0
        %395 = vmatpush1.msra.mxu0 0.0
        %396 = vmatprep.subr.mxu0 0.0
        %397 = vmatpush1.msra.mxu0 0.0
        %398 = vmatprep.subr.mxu0 0.0
        %399 = vmatpush1.msra.mxu0 0.0
        %400 = vmatprep.subr.mxu0 0.0
        %401 = vmatpush1.msra.mxu0 0.0
        %402 = vmatprep.subr.mxu0 0.0
        %403 = vmatpush1.msra.mxu0 0.0
        %404 = vmatprep.subr.mxu0 0.0
        %405 = vmatpush1.msra.mxu0 0.0
        %406 = vmatprep.subr.mxu0 0.0
        %407 = vmatpush1.msra.mxu0 0.0
        %408 = vmatprep.subr.mxu0 0.0
        %409 = vmatpush1.msra.mxu0 0.0
        %410 = vmatprep.subr.mxu0 0.0
        %411 = vmatpush1.msra.mxu0 0.0
        %412 = vmatprep.subr.mxu0 0.0
        %413 = vmatpush1.msra.mxu0 0.0
        %414 = vmatprep.mubr.f32.mxu0 0.0
        %v415 = vand.u32 %v239, 4294901760
        %416 = vmatmul.mubr.f32.gmra.mrb[0].mxu0 %v415
        %v417 = vpop.f32.mrb[0].mxu0
        %v418 = vadd.f32 %v322, %v417
        %v419 = vpop.f32.mrb[0].mxu0
        %420 = vdwg.mxu0
        %421 = vmatprep.subr.mxu0 0.0
        %v422 = vand.u32 %v233, 4294901760
        %v423 = vsub.f32 %v233, %v422
        %424 = vmatpush1.msra.mxu0 %v423
        %425 = vmatprep.subr.mxu0 0.0
        %v426 = vand.u32 %v234, 4294901760
        %v427 = vsub.f32 %v234, %v426
        %428 = vmatpush1.msra.mxu0 %v427
        %429 = vmatprep.subr.mxu0 0.0
        %v430 = vand.u32 %v235, 4294901760
        %v431 = vsub.f32 %v235, %v430
        %432 = vmatpush1.msra.mxu0 %v431
        %433 = vmatprep.subr.mxu0 0.0
        %v434 = vand.u32 %v236, 4294901760
        %v435 = vsub.f32 %v236, %v434
        %436 = vmatpush1.msra.mxu0 %v435
        %437 = vmatprep.subr.mxu0 0.0
        %v438 = vand.u32 %v243, 4294901760
        %v439 = vsub.f32 %v243, %v438
        %440 = vmatpush1.msra.mxu0 %v439
        %441 = vmatprep.subr.mxu0 0.0
        %442 = vmatpush1.msra.mxu0 0.0
        %443 = vmatprep.subr.mxu0 0.0
        %444 = vmatpush1.msra.mxu0 0.0
        %445 = vmatprep.subr.mxu0 0.0
        %446 = vmatpush1.msra.mxu0 0.0
        %447 = vmatprep.subr.mxu0 0.0
        %448 = vmatpush1.msra.mxu0 0.0
        %449 = vmatprep.subr.mxu0 0.0
        %450 = vmatpush1.msra.mxu0 0.0
        %451 = vmatprep.subr.mxu0 0.0
        %452 = vmatpush1.msra.mxu0 0.0
        %453 = vmatprep.subr.mxu0 0.0
        %454 = vmatpush1.msra.mxu0 0.0
        %455 = vmatprep.subr.mxu0 0.0
        %456 = vmatpush1.msra.mxu0 0.0
        %457 = vmatprep.subr.mxu0 0.0
        %458 = vmatpush1.msra.mxu0 0.0
        %459 = vmatprep.subr.mxu0 0.0
        %460 = vmatpush1.msra.mxu0 0.0
        %461 = vmatprep.subr.mxu0 0.0
        %462 = vmatpush1.msra.mxu0 0.0
        %463 = vmatprep.subr.mxu0 0.0
        %464 = vmatpush1.msra.mxu0 0.0
        %465 = vmatprep.subr.mxu0 0.0
        %466 = vmatpush1.msra.mxu0 0.0
        %467 = vmatprep.subr.mxu0 0.0
        %468 = vmatpush1.msra.mxu0 0.0
        %469 = vmatprep.subr.mxu0 0.0
        %470 = vmatpush1.msra.mxu0 0.0
        %471 = vmatprep.subr.mxu0 0.0
        %472 = vmatpush1.msra.mxu0 0.0
        %473 = vmatprep.subr.mxu0 0.0
        %474 = vmatpush1.msra.mxu0 0.0
        %475 = vmatprep.subr.mxu0 0.0
        %476 = vmatpush1.msra.mxu0 0.0
        %477 = vmatprep.subr.mxu0 0.0
        %478 = vmatpush1.msra.mxu0 0.0
        %479 = vmatprep.subr.mxu0 0.0
        %480 = vmatpush1.msra.mxu0 0.0
        %481 = vmatprep.subr.mxu0 0.0
        %482 = vmatpush1.msra.mxu0 0.0
        %483 = vmatprep.subr.mxu0 0.0
        %484 = vmatpush1.msra.mxu0 0.0
        %485 = vmatprep.subr.mxu0 0.0
        %486 = vmatpush1.msra.mxu0 0.0
        %487 = vmatprep.subr.mxu0 0.0
        %488 = vmatpush1.msra.mxu0 0.0
        %489 = vmatprep.subr.mxu0 0.0
        %490 = vmatpush1.msra.mxu0 0.0
        %491 = vmatprep.subr.mxu0 0.0
        %492 = vmatpush1.msra.mxu0 0.0
        %493 = vmatprep.subr.mxu0 0.0
        %494 = vmatpush1.msra.mxu0 0.0
        %495 = vmatprep.mubr.f32.mxu0 0.0
        %v496 = vand.u32 %v239, 4294901760
        %v497 = vsub.f32 %v239, %v496
        %498 = vmatmul.mubr.f32.gmra.mrb[0].mxu0 %v497
        %v499 = vpop.f32.mrb[0].mxu0
        %v500 = vadd.f32 %v418, %v499
        %v501 = vpop.f32.mrb[0].mxu0
        %502 = vdwg.mxu0
        %503 = vmatprep.subr.mxu0 0.0
        %v504 = vand.u32 %v233, 4294901760
        %505 = vmatpush1.msra.mxu0 %v504
        %506 = vmatprep.subr.mxu0 0.0
        %v507 = vand.u32 %v234, 4294901760
        %508 = vmatpush1.msra.mxu0 %v507
        %509 = vmatprep.subr.mxu0 0.0
        %v510 = vand.u32 %v235, 4294901760
        %511 = vmatpush1.msra.mxu0 %v510
        %512 = vmatprep.subr.mxu0 0.0
        %v513 = vand.u32 %v236, 4294901760
        %514 = vmatpush1.msra.mxu0 %v513
        %515 = vmatprep.subr.mxu0 0.0
        %v516 = vand.u32 %v243, 4294901760
        %517 = vmatpush1.msra.mxu0 %v516
        %518 = vmatprep.subr.mxu0 0.0
        %519 = vmatpush1.msra.mxu0 0.0
        %520 = vmatprep.subr.mxu0 0.0
        %521 = vmatpush1.msra.mxu0 0.0
        %522 = vmatprep.subr.mxu0 0.0
        %523 = vmatpush1.msra.mxu0 0.0
        %524 = vmatprep.subr.mxu0 0.0
        %525 = vmatpush1.msra.mxu0 0.0
        %526 = vmatprep.subr.mxu0 0.0
        %527 = vmatpush1.msra.mxu0 0.0
        %528 = vmatprep.subr.mxu0 0.0
        %529 = vmatpush1.msra.mxu0 0.0
        %530 = vmatprep.subr.mxu0 0.0
        %531 = vmatpush1.msra.mxu0 0.0
        %532 = vmatprep.subr.mxu0 0.0
        %533 = vmatpush1.msra.mxu0 0.0
        %534 = vmatprep.subr.mxu0 0.0
        %535 = vmatpush1.msra.mxu0 0.0
        %536 = vmatprep.subr.mxu0 0.0
        %537 = vmatpush1.msra.mxu0 0.0
        %538 = vmatprep.subr.mxu0 0.0
        %539 = vmatpush1.msra.mxu0 0.0
        %540 = vmatprep.subr.mxu0 0.0
        %541 = vmatpush1.msra.mxu0 0.0
        %542 = vmatprep.subr.mxu0 0.0
        %543 = vmatpush1.msra.mxu0 0.0
        %544 = vmatprep.subr.mxu0 0.0
        %545 = vmatpush1.msra.mxu0 0.0
        %546 = vmatprep.subr.mxu0 0.0
        %547 = vmatpush1.msra.mxu0 0.0
        %548 = vmatprep.subr.mxu0 0.0
        %549 = vmatpush1.msra.mxu0 0.0
        %550 = vmatprep.subr.mxu0 0.0
        %551 = vmatpush1.msra.mxu0 0.0
        %552 = vmatprep.subr.mxu0 0.0
        %553 = vmatpush1.msra.mxu0 0.0
        %554 = vmatprep.subr.mxu0 0.0
        %555 = vmatpush1.msra.mxu0 0.0
        %556 = vmatprep.subr.mxu0 0.0
        %557 = vmatpush1.msra.mxu0 0.0
        %558 = vmatprep.subr.mxu0 0.0
        %559 = vmatpush1.msra.mxu0 0.0
        %560 = vmatprep.subr.mxu0 0.0
        %561 = vmatpush1.msra.mxu0 0.0
        %562 = vmatprep.subr.mxu0 0.0
        %563 = vmatpush1.msra.mxu0 0.0
        %564 = vmatprep.subr.mxu0 0.0
        %565 = vmatpush1.msra.mxu0 0.0
        %566 = vmatprep.subr.mxu0 0.0
        %567 = vmatpush1.msra.mxu0 0.0
        %568 = vmatprep.subr.mxu0 0.0
        %569 = vmatpush1.msra.mxu0 0.0
        %570 = vmatprep.subr.mxu0 0.0
        %571 = vmatpush1.msra.mxu0 0.0
        %572 = vmatprep.mubr.f32.mxu0 0.0
        %v573 = vand.u32 %v239, 4294901760
        %v574 = vsub.f32 %v239, %v573
        %v575 = vand.u32 %v574, 4294901760
        %576 = vmatmul.mubr.f32.gmra.mrb[0].mxu0 %v575
        %v577 = vpop.f32.mrb[0].mxu0
        %v578 = vadd.f32 %v500, %v577
        %v579 = vpop.f32.mrb[0].mxu0
        %580 = vdwg.mxu0
        %581 = vmatprep.subr.mxu0 0.0
        %v582 = vand.u32 %v233, 4294901760
        %v583 = vsub.f32 %v233, %v582
        %v584 = vand.u32 %v583, 4294901760
        %585 = vmatpush1.msra.mxu0 %v584
        %586 = vmatprep.subr.mxu0 0.0
        %v587 = vand.u32 %v234, 4294901760
        %v588 = vsub.f32 %v234, %v587
        %v589 = vand.u32 %v588, 4294901760
        %590 = vmatpush1.msra.mxu0 %v589
        %591 = vmatprep.subr.mxu0 0.0
        %v592 = vand.u32 %v235, 4294901760
        %v593 = vsub.f32 %v235, %v592
        %v594 = vand.u32 %v593, 4294901760
        %595 = vmatpush1.msra.mxu0 %v594
        %596 = vmatprep.subr.mxu0 0.0
        %v597 = vand.u32 %v236, 4294901760
        %v598 = vsub.f32 %v236, %v597
        %v599 = vand.u32 %v598, 4294901760
        %600 = vmatpush1.msra.mxu0 %v599
        %601 = vmatprep.subr.mxu0 0.0
        %v602 = vand.u32 %v243, 4294901760
        %v603 = vsub.f32 %v243, %v602
        %v604 = vand.u32 %v603, 4294901760
        %605 = vmatpush1.msra.mxu0 %v604
        %606 = vmatprep.subr.mxu0 0.0
        %607 = vmatpush1.msra.mxu0 0.0
        %608 = vmatprep.subr.mxu0 0.0
        %609 = vmatpush1.msra.mxu0 0.0
        %610 = vmatprep.subr.mxu0 0.0
        %611 = vmatpush1.msra.mxu0 0.0
        %612 = vmatprep.subr.mxu0 0.0
        %613 = vmatpush1.msra.mxu0 0.0
        %614 = vmatprep.subr.mxu0 0.0
        %615 = vmatpush1.msra.mxu0 0.0
        %616 = vmatprep.subr.mxu0 0.0
        %617 = vmatpush1.msra.mxu0 0.0
        %618 = vmatprep.subr.mxu0 0.0
        %619 = vmatpush1.msra.mxu0 0.0
        %620 = vmatprep.subr.mxu0 0.0
        %621 = vmatpush1.msra.mxu0 0.0
        %622 = vmatprep.subr.mxu0 0.0
        %623 = vmatpush1.msra.mxu0 0.0
        %624 = vmatprep.subr.mxu0 0.0
        %625 = vmatpush1.msra.mxu0 0.0
        %626 = vmatprep.subr.mxu0 0.0
        %627 = vmatpush1.msra.mxu0 0.0
        %628 = vmatprep.subr.mxu0 0.0
        %629 = vmatpush1.msra.mxu0 0.0
        %630 = vmatprep.subr.mxu0 0.0
        %631 = vmatpush1.msra.mxu0 0.0
        %632 = vmatprep.subr.mxu0 0.0
        %633 = vmatpush1.msra.mxu0 0.0
        %634 = vmatprep.subr.mxu0 0.0
        %635 = vmatpush1.msra.mxu0 0.0
        %636 = vmatprep.subr.mxu0 0.0
        %637 = vmatpush1.msra.mxu0 0.0
        %638 = vmatprep.subr.mxu0 0.0
        %639 = vmatpush1.msra.mxu0 0.0
        %640 = vmatprep.subr.mxu0 0.0
        %641 = vmatpush1.msra.mxu0 0.0
        %642 = vmatprep.subr.mxu0 0.0
        %643 = vmatpush1.msra.mxu0 0.0
        %644 = vmatprep.subr.mxu0 0.0
        %645 = vmatpush1.msra.mxu0 0.0
        %646 = vmatprep.subr.mxu0 0.0
        %647 = vmatpush1.msra.mxu0 0.0
        %648 = vmatprep.subr.mxu0 0.0
        %649 = vmatpush1.msra.mxu0 0.0
        %650 = vmatprep.subr.mxu0 0.0
        %651 = vmatpush1.msra.mxu0 0.0
        %652 = vmatprep.subr.mxu0 0.0
        %653 = vmatpush1.msra.mxu0 0.0
        %654 = vmatprep.subr.mxu0 0.0
        %655 = vmatpush1.msra.mxu0 0.0
        %656 = vmatprep.subr.mxu0 0.0
        %657 = vmatpush1.msra.mxu0 0.0
        %658 = vmatprep.subr.mxu0 0.0
        %659 = vmatpush1.msra.mxu0 0.0
        %660 = vmatprep.mubr.f32.mxu0 0.0
        %v661 = vand.u32 %v239, 4294901760
        %662 = vmatmul.mubr.f32.gmra.mrb[0].mxu0 %v661
        %v663 = vpop.f32.mrb[0].mxu0
        %v664 = vadd.f32 %v578, %v663
        %v665 = vpop.f32.mrb[0].mxu0
        %666 = vdwg.mxu0
        %667 = vmatprep.subr.mxu0 0.0
        %v668 = vand.u32 %v233, 4294901760
        %669 = vmatpush1.msra.mxu0 %v668
        %670 = vmatprep.subr.mxu0 0.0
        %v671 = vand.u32 %v234, 4294901760
        %672 = vmatpush1.msra.mxu0 %v671
        %673 = vmatprep.subr.mxu0 0.0
        %v674 = vand.u32 %v235, 4294901760
        %675 = vmatpush1.msra.mxu0 %v674
        %676 = vmatprep.subr.mxu0 0.0
        %v677 = vand.u32 %v236, 4294901760
        %678 = vmatpush1.msra.mxu0 %v677
        %679 = vmatprep.subr.mxu0 0.0
        %v680 = vand.u32 %v243, 4294901760
        %681 = vmatpush1.msra.mxu0 %v680
        %682 = vmatprep.subr.mxu0 0.0
        %683 = vmatpush1.msra.mxu0 0.0
        %684 = vmatprep.subr.mxu0 0.0
        %685 = vmatpush1.msra.mxu0 0.0
        %686 = vmatprep.subr.mxu0 0.0
        %687 = vmatpush1.msra.mxu0 0.0
        %688 = vmatprep.subr.mxu0 0.0
        %689 = vmatpush1.msra.mxu0 0.0
        %690 = vmatprep.subr.mxu0 0.0
        %691 = vmatpush1.msra.mxu0 0.0
        %692 = vmatprep.subr.mxu0 0.0
        %693 = vmatpush1.msra.mxu0 0.0
        %694 = vmatprep.subr.mxu0 0.0
        %695 = vmatpush1.msra.mxu0 0.0
        %696 = vmatprep.subr.mxu0 0.0
        %697 = vmatpush1.msra.mxu0 0.0
        %698 = vmatprep.subr.mxu0 0.0
        %699 = vmatpush1.msra.mxu0 0.0
        %700 = vmatprep.subr.mxu0 0.0
        %701 = vmatpush1.msra.mxu0 0.0
        %702 = vmatprep.subr.mxu0 0.0
        %703 = vmatpush1.msra.mxu0 0.0
        %704 = vmatprep.subr.mxu0 0.0
        %705 = vmatpush1.msra.mxu0 0.0
        %706 = vmatprep.subr.mxu0 0.0
        %707 = vmatpush1.msra.mxu0 0.0
        %708 = vmatprep.subr.mxu0 0.0
        %709 = vmatpush1.msra.mxu0 0.0
        %710 = vmatprep.subr.mxu0 0.0
        %711 = vmatpush1.msra.mxu0 0.0
        %712 = vmatprep.subr.mxu0 0.0
        %713 = vmatpush1.msra.mxu0 0.0
        %714 = vmatprep.subr.mxu0 0.0
        %715 = vmatpush1.msra.mxu0 0.0
        %716 = vmatprep.subr.mxu0 0.0
        %717 = vmatpush1.msra.mxu0 0.0
        %718 = vmatprep.subr.mxu0 0.0
        %719 = vmatpush1.msra.mxu0 0.0
        %720 = vmatprep.subr.mxu0 0.0
        %721 = vmatpush1.msra.mxu0 0.0
        %722 = vmatprep.subr.mxu0 0.0
        %723 = vmatpush1.msra.mxu0 0.0
        %724 = vmatprep.subr.mxu0 0.0
        %725 = vmatpush1.msra.mxu0 0.0
        %726 = vmatprep.subr.mxu0 0.0
        %727 = vmatpush1.msra.mxu0 0.0
        %728 = vmatprep.subr.mxu0 0.0
        %729 = vmatpush1.msra.mxu0 0.0
        %730 = vmatprep.subr.mxu0 0.0
        %731 = vmatpush1.msra.mxu0 0.0
        %732 = vmatprep.subr.mxu0 0.0
        %733 = vmatpush1.msra.mxu0 0.0
        %734 = vmatprep.subr.mxu0 0.0
        %735 = vmatpush1.msra.mxu0 0.0
        %736 = vmatprep.mubr.f32.mxu0 0.0
        %v737 = vand.u32 %v239, 4294901760
        %738 = vmatmul.mubr.f32.gmra.mrb[0].mxu0 %v737
        %v739 = vpop.f32.mrb[0].mxu0
        %v740 = vadd.f32 %v664, %v739
        %v741 = vpop.f32.mrb[0].mxu0
        %742 = vdwg.mxu0
        %v743 = vmax.f32 %v740, 0.0
        %s744 = scalar_lea.vmem %s1, 4
        %v745 = vld [vmem:[%s744] sm:$0xf]
        %747 = vrot.lane.b32.xlu0 %v743, 125
        %v748 = vpop.permute.xlu0 %747
        %750 = vrot.lane.b32.xlu0 %v743, 127
        %v751 = vpop.permute.xlu0 %750
        %753 = vrot.lane.b32.xlu0 %v743, 1
        %v754 = vpop.permute.xlu0 %753
        %756 = vrot.lane.b32.xlu0 %v743, 3
        %v757 = vpop.permute.xlu0 %756
        %759 = vrot.lane.b32.xlu0 %v743, 5
        %v760 = vpop.permute.xlu0 %759
        %762 = vrot.lane.b32.xlu0 %v743, 7
        %v763 = vpop.permute.xlu0 %762
        %765 = vrot.lane.b32.xlu0 %v743, 9
        %v766 = vpop.permute.xlu0 %765
        %768 = vrot.lane.b32.xlu0 %v743, 11
        %v769 = vpop.permute.xlu0 %768
        %v771 = vsel %vm166, %v748, %v751
        %v772 = vsel %vm168, %v771, %v754
        %v773 = vsel %vm170, %v772, %v757
        %v774 = vsel %vm170, %v757, %v760
        %v775 = vsel %vm173, %v774, %v763
        %v776 = vsel %vm175, %v775, %v766
        %v777 = vsel %vm177, %v776, %v769
        %v780 = vrot.slane %v773, 4
        %v781 = vrot.slane %v777, 4
        %782 = vrot.lane.b32.xlu0 %v780, 127
        %v783 = vpop.permute.xlu0 %782
        %784 = vrot.lane.b32.xlu0 %v781, 127
        %v785 = vpop.permute.xlu0 %784
        %v786 = vsel %vm187, %v783, %v785
        %788 = vrot.lane.b32.xlu0 %v773, 126
        %v789 = vpop.permute.xlu0 %788
        %790 = vrot.lane.b32.xlu0 %v777, 126
        %v791 = vpop.permute.xlu0 %790
        %v792 = vsel %vm194, %v789, %v791
        %794 = vrot.lane.b32.xlu0 %v780, 125
        %v795 = vpop.permute.xlu0 %794
        %796 = vrot.lane.b32.xlu0 %v781, 125
        %v797 = vpop.permute.xlu0 %796
        %v798 = vsel %vm201, %v795, %v797
        %800 = vrot.lane.b32.xlu0 %v773, 124
        %v801 = vpop.permute.xlu0 %800
        %802 = vrot.lane.b32.xlu0 %v777, 124
        %v803 = vpop.permute.xlu0 %802
        %v804 = vsel %vm208, %v801, %v803
        %806 = vrot.lane.b32.xlu0 %v780, 123
        %v807 = vpop.permute.xlu0 %806
        %808 = vrot.lane.b32.xlu0 %v781, 123
        %v809 = vpop.permute.xlu0 %808
        %v810 = vsel %vm215, %v807, %v809
        %812 = vrot.lane.b32.xlu0 %v773, 122
        %v813 = vpop.permute.xlu0 %812
        %814 = vrot.lane.b32.xlu0 %v777, 122
        %v815 = vpop.permute.xlu0 %814
        %v816 = vsel %vm222, %v813, %v815
        %818 = vrot.lane.b32.xlu0 %v780, 121
        %v819 = vpop.permute.xlu0 %818
        %820 = vrot.lane.b32.xlu0 %v781, 121
        %v821 = vpop.permute.xlu0 %820
        %v822 = vsel %vm229, %v819, %v821
        %v824 = vsel %vm232, %v773, %v786
        %v825 = vsel %vm232, %v792, %v798
        %v826 = vsel %vm232, %v804, %v810
        %v827 = vsel %vm232, %v816, %v822
        %v829 = vsel %vm237, %v745, 0
        %831 = vmatprep.subr.mxu0 0.0
        %v832 = vand.u32 %v824, 4294901760
        %833 = vmatpush1.msra.mxu0 %v832
        %834 = vmatprep.subr.mxu0 0.0
        %v835 = vand.u32 %v825, 4294901760
        %836 = vmatpush1.msra.mxu0 %v835
        %837 = vmatprep.subr.mxu0 0.0
        %v838 = vand.u32 %v826, 4294901760
        %839 = vmatpush1.msra.mxu0 %v838
        %840 = vmatprep.subr.mxu0 0.0
        %v841 = vand.u32 %v827, 4294901760
        %842 = vmatpush1.msra.mxu0 %v841
        %843 = vmatprep.subr.mxu0 0.0
        %v844 = vand.u32 %v243, 4294901760
        %845 = vmatpush1.msra.mxu0 %v844
        %846 = vmatprep.subr.mxu0 0.0
        %847 = vmatpush1.msra.mxu0 0.0
        %848 = vmatprep.subr.mxu0 0.0
        %849 = vmatpush1.msra.mxu0 0.0
        %850 = vmatprep.subr.mxu0 0.0
        %851 = vmatpush1.msra.mxu0 0.0
        %852 = vmatprep.subr.mxu0 0.0
        %853 = vmatpush1.msra.mxu0 0.0
        %854 = vmatprep.subr.mxu0 0.0
        %855 = vmatpush1.msra.mxu0 0.0
        %856 = vmatprep.subr.mxu0 0.0
        %857 = vmatpush1.msra.mxu0 0.0
        %858 = vmatprep.subr.mxu0 0.0
        %859 = vmatpush1.msra.mxu0 0.0
        %860 = vmatprep.subr.mxu0 0.0
        %861 = vmatpush1.msra.mxu0 0.0
        %862 = vmatprep.subr.mxu0 0.0
        %863 = vmatpush1.msra.mxu0 0.0
        %864 = vmatprep.subr.mxu0 0.0
        %865 = vmatpush1.msra.mxu0 0.0
        %866 = vmatprep.subr.mxu0 0.0
        %867 = vmatpush1.msra.mxu0 0.0
        %868 = vmatprep.subr.mxu0 0.0
        %869 = vmatpush1.msra.mxu0 0.0
        %870 = vmatprep.subr.mxu0 0.0
        %871 = vmatpush1.msra.mxu0 0.0
        %872 = vmatprep.subr.mxu0 0.0
        %873 = vmatpush1.msra.mxu0 0.0
        %874 = vmatprep.subr.mxu0 0.0
        %875 = vmatpush1.msra.mxu0 0.0
        %876 = vmatprep.subr.mxu0 0.0
        %877 = vmatpush1.msra.mxu0 0.0
        %878 = vmatprep.subr.mxu0 0.0
        %879 = vmatpush1.msra.mxu0 0.0
        %880 = vmatprep.subr.mxu0 0.0
        %881 = vmatpush1.msra.mxu0 0.0
        %882 = vmatprep.subr.mxu0 0.0
        %883 = vmatpush1.msra.mxu0 0.0
        %884 = vmatprep.subr.mxu0 0.0
        %885 = vmatpush1.msra.mxu0 0.0
        %886 = vmatprep.subr.mxu0 0.0
        %887 = vmatpush1.msra.mxu0 0.0
        %888 = vmatprep.subr.mxu0 0.0
        %889 = vmatpush1.msra.mxu0 0.0
        %890 = vmatprep.subr.mxu0 0.0
        %891 = vmatpush1.msra.mxu0 0.0
        %892 = vmatprep.subr.mxu0 0.0
        %893 = vmatpush1.msra.mxu0 0.0
        %894 = vmatprep.subr.mxu0 0.0
        %895 = vmatpush1.msra.mxu0 0.0
        %896 = vmatprep.subr.mxu0 0.0
        %897 = vmatpush1.msra.mxu0 0.0
        %898 = vmatprep.subr.mxu0 0.0
        %899 = vmatpush1.msra.mxu0 0.0
        %900 = vmatprep.mubr.f32.mxu0 0.0
        %v901 = vand.u32 %v829, 4294901760
        %v902 = vsub.f32 %v829, %v901
        %v903 = vand.u32 %v902, 4294901760
        %v904 = vsub.f32 %v902, %v903
        %v905 = vand.u32 %v904, 4294901760
        %906 = vmatmul.mubr.f32.gmra.mrb[0].mxu0 %v905
        %v907 = vpop.f32.mrb[0].mxu0
        %v908 = vadd.f32 0.0, %v907
        %v909 = vpop.f32.mrb[0].mxu0
        %910 = vdwg.mxu0
        %911 = vmatprep.subr.mxu0 0.0
        %v912 = vand.u32 %v824, 4294901760
        %v913 = vsub.f32 %v824, %v912
        %v914 = vand.u32 %v913, 4294901760
        %v915 = vsub.f32 %v913, %v914
        %v916 = vand.u32 %v915, 4294901760
        %917 = vmatpush1.msra.mxu0 %v916
        %918 = vmatprep.subr.mxu0 0.0
        %v919 = vand.u32 %v825, 4294901760
        %v920 = vsub.f32 %v825, %v919
        %v921 = vand.u32 %v920, 4294901760
        %v922 = vsub.f32 %v920, %v921
        %v923 = vand.u32 %v922, 4294901760
        %924 = vmatpush1.msra.mxu0 %v923
        %925 = vmatprep.subr.mxu0 0.0
        %v926 = vand.u32 %v826, 4294901760
        %v927 = vsub.f32 %v826, %v926
        %v928 = vand.u32 %v927, 4294901760
        %v929 = vsub.f32 %v927, %v928
        %v930 = vand.u32 %v929, 4294901760
        %931 = vmatpush1.msra.mxu0 %v930
        %932 = vmatprep.subr.mxu0 0.0
        %v933 = vand.u32 %v827, 4294901760
        %v934 = vsub.f32 %v827, %v933
        %v935 = vand.u32 %v934, 4294901760
        %v936 = vsub.f32 %v934, %v935
        %v937 = vand.u32 %v936, 4294901760
        %938 = vmatpush1.msra.mxu0 %v937
        %939 = vmatprep.subr.mxu0 0.0
        %v940 = vand.u32 %v243, 4294901760
        %v941 = vsub.f32 %v243, %v940
        %v942 = vand.u32 %v941, 4294901760
        %v943 = vsub.f32 %v941, %v942
        %v944 = vand.u32 %v943, 4294901760
        %945 = vmatpush1.msra.mxu0 %v944
        %946 = vmatprep.subr.mxu0 0.0
        %947 = vmatpush1.msra.mxu0 0.0
        %948 = vmatprep.subr.mxu0 0.0
        %949 = vmatpush1.msra.mxu0 0.0
        %950 = vmatprep.subr.mxu0 0.0
        %951 = vmatpush1.msra.mxu0 0.0
        %952 = vmatprep.subr.mxu0 0.0
        %953 = vmatpush1.msra.mxu0 0.0
        %954 = vmatprep.subr.mxu0 0.0
        %955 = vmatpush1.msra.mxu0 0.0
        %956 = vmatprep.subr.mxu0 0.0
        %957 = vmatpush1.msra.mxu0 0.0
        %958 = vmatprep.subr.mxu0 0.0
        %959 = vmatpush1.msra.mxu0 0.0
        %960 = vmatprep.subr.mxu0 0.0
        %961 = vmatpush1.msra.mxu0 0.0
        %962 = vmatprep.subr.mxu0 0.0
        %963 = vmatpush1.msra.mxu0 0.0
        %964 = vmatprep.subr.mxu0 0.0
        %965 = vmatpush1.msra.mxu0 0.0
        %966 = vmatprep.subr.mxu0 0.0
        %967 = vmatpush1.msra.mxu0 0.0
        %968 = vmatprep.subr.mxu0 0.0
        %969 = vmatpush1.msra.mxu0 0.0
        %970 = vmatprep.subr.mxu0 0.0
        %971 = vmatpush1.msra.mxu0 0.0
        %972 = vmatprep.subr.mxu0 0.0
        %973 = vmatpush1.msra.mxu0 0.0
        %974 = vmatprep.subr.mxu0 0.0
        %975 = vmatpush1.msra.mxu0 0.0
        %976 = vmatprep.subr.mxu0 0.0
        %977 = vmatpush1.msra.mxu0 0.0
        %978 = vmatprep.subr.mxu0 0.0
        %979 = vmatpush1.msra.mxu0 0.0
        %980 = vmatprep.subr.mxu0 0.0
        %981 = vmatpush1.msra.mxu0 0.0
        %982 = vmatprep.subr.mxu0 0.0
        %983 = vmatpush1.msra.mxu0 0.0
        %984 = vmatprep.subr.mxu0 0.0
        %985 = vmatpush1.msra.mxu0 0.0
        %986 = vmatprep.subr.mxu0 0.0
        %987 = vmatpush1.msra.mxu0 0.0
        %988 = vmatprep.subr.mxu0 0.0
        %989 = vmatpush1.msra.mxu0 0.0
        %990 = vmatprep.subr.mxu0 0.0
        %991 = vmatpush1.msra.mxu0 0.0
        %992 = vmatprep.subr.mxu0 0.0
        %993 = vmatpush1.msra.mxu0 0.0
        %994 = vmatprep.subr.mxu0 0.0
        %995 = vmatpush1.msra.mxu0 0.0
        %996 = vmatprep.subr.mxu0 0.0
        %997 = vmatpush1.msra.mxu0 0.0
        %998 = vmatprep.subr.mxu0 0.0
        %999 = vmatpush1.msra.mxu0 0.0
        %1000 = vmatprep.mubr.f32.mxu0 0.0
        %v1001 = vand.u32 %v829, 4294901760
        %1002 = vmatmul.mubr.f32.gmra.mrb[0].mxu0 %v1001
        %v1003 = vpop.f32.mrb[0].mxu0
        %v1004 = vadd.f32 %v908, %v1003
        %v1005 = vpop.f32.mrb[0].mxu0
        %1006 = vdwg.mxu0
        %1007 = vmatprep.subr.mxu0 0.0
        %v1008 = vand.u32 %v824, 4294901760
        %v1009 = vsub.f32 %v824, %v1008
        %1010 = vmatpush1.msra.mxu0 %v1009
        %1011 = vmatprep.subr.mxu0 0.0
        %v1012 = vand.u32 %v825, 4294901760
        %v1013 = vsub.f32 %v825, %v1012
        %1014 = vmatpush1.msra.mxu0 %v1013
        %1015 = vmatprep.subr.mxu0 0.0
        %v1016 = vand.u32 %v826, 4294901760
        %v1017 = vsub.f32 %v826, %v1016
        %1018 = vmatpush1.msra.mxu0 %v1017
        %1019 = vmatprep.subr.mxu0 0.0
        %v1020 = vand.u32 %v827, 4294901760
        %v1021 = vsub.f32 %v827, %v1020
        %1022 = vmatpush1.msra.mxu0 %v1021
        %1023 = vmatprep.subr.mxu0 0.0
        %v1024 = vand.u32 %v243, 4294901760
        %v1025 = vsub.f32 %v243, %v1024
        %1026 = vmatpush1.msra.mxu0 %v1025
        %1027 = vmatprep.subr.mxu0 0.0
        %1028 = vmatpush1.msra.mxu0 0.0
        %1029 = vmatprep.subr.mxu0 0.0
        %1030 = vmatpush1.msra.mxu0 0.0
        %1031 = vmatprep.subr.mxu0 0.0
        %1032 = vmatpush1.msra.mxu0 0.0
        %1033 = vmatprep.subr.mxu0 0.0
        %1034 = vmatpush1.msra.mxu0 0.0
        %1035 = vmatprep.subr.mxu0 0.0
        %1036 = vmatpush1.msra.mxu0 0.0
        %1037 = vmatprep.subr.mxu0 0.0
        %1038 = vmatpush1.msra.mxu0 0.0
        %1039 = vmatprep.subr.mxu0 0.0
        %1040 = vmatpush1.msra.mxu0 0.0
        %1041 = vmatprep.subr.mxu0 0.0
        %1042 = vmatpush1.msra.mxu0 0.0
        %1043 = vmatprep.subr.mxu0 0.0
        %1044 = vmatpush1.msra.mxu0 0.0
        %1045 = vmatprep.subr.mxu0 0.0
        %1046 = vmatpush1.msra.mxu0 0.0
        %1047 = vmatprep.subr.mxu0 0.0
        %1048 = vmatpush1.msra.mxu0 0.0
        %1049 = vmatprep.subr.mxu0 0.0
        %1050 = vmatpush1.msra.mxu0 0.0
        %1051 = vmatprep.subr.mxu0 0.0
        %1052 = vmatpush1.msra.mxu0 0.0
        %1053 = vmatprep.subr.mxu0 0.0
        %1054 = vmatpush1.msra.mxu0 0.0
        %1055 = vmatprep.subr.mxu0 0.0
        %1056 = vmatpush1.msra.mxu0 0.0
        %1057 = vmatprep.subr.mxu0 0.0
        %1058 = vmatpush1.msra.mxu0 0.0
        %1059 = vmatprep.subr.mxu0 0.0
        %1060 = vmatpush1.msra.mxu0 0.0
        %1061 = vmatprep.subr.mxu0 0.0
        %1062 = vmatpush1.msra.mxu0 0.0
        %1063 = vmatprep.subr.mxu0 0.0
        %1064 = vmatpush1.msra.mxu0 0.0
        %1065 = vmatprep.subr.mxu0 0.0
        %1066 = vmatpush1.msra.mxu0 0.0
        %1067 = vmatprep.subr.mxu0 0.0
        %1068 = vmatpush1.msra.mxu0 0.0
        %1069 = vmatprep.subr.mxu0 0.0
        %1070 = vmatpush1.msra.mxu0 0.0
        %1071 = vmatprep.subr.mxu0 0.0
        %1072 = vmatpush1.msra.mxu0 0.0
        %1073 = vmatprep.subr.mxu0 0.0
        %1074 = vmatpush1.msra.mxu0 0.0
        %1075 = vmatprep.subr.mxu0 0.0
        %1076 = vmatpush1.msra.mxu0 0.0
        %1077 = vmatprep.subr.mxu0 0.0
        %1078 = vmatpush1.msra.mxu0 0.0
        %1079 = vmatprep.subr.mxu0 0.0
        %1080 = vmatpush1.msra.mxu0 0.0
        %1081 = vmatprep.mubr.f32.mxu0 0.0
        %v1082 = vand.u32 %v829, 4294901760
        %v1083 = vsub.f32 %v829, %v1082
        %1084 = vmatmul.mubr.f32.gmra.mrb[0].mxu0 %v1083
        %v1085 = vpop.f32.mrb[0].mxu0
        %v1086 = vadd.f32 %v1004, %v1085
        %v1087 = vpop.f32.mrb[0].mxu0
        %1088 = vdwg.mxu0
        %1089 = vmatprep.subr.mxu0 0.0
        %v1090 = vand.u32 %v824, 4294901760
        %1091 = vmatpush1.msra.mxu0 %v1090
        %1092 = vmatprep.subr.mxu0 0.0
        %v1093 = vand.u32 %v825, 4294901760
        %1094 = vmatpush1.msra.mxu0 %v1093
        %1095 = vmatprep.subr.mxu0 0.0
        %v1096 = vand.u32 %v826, 4294901760
        %1097 = vmatpush1.msra.mxu0 %v1096
        %1098 = vmatprep.subr.mxu0 0.0
        %v1099 = vand.u32 %v827, 4294901760
        %1100 = vmatpush1.msra.mxu0 %v1099
        %1101 = vmatprep.subr.mxu0 0.0
        %v1102 = vand.u32 %v243, 4294901760
        %1103 = vmatpush1.msra.mxu0 %v1102
        %1104 = vmatprep.subr.mxu0 0.0
        %1105 = vmatpush1.msra.mxu0 0.0
        %1106 = vmatprep.subr.mxu0 0.0
        %1107 = vmatpush1.msra.mxu0 0.0
        %1108 = vmatprep.subr.mxu0 0.0
        %1109 = vmatpush1.msra.mxu0 0.0
        %1110 = vmatprep.subr.mxu0 0.0
        %1111 = vmatpush1.msra.mxu0 0.0
        %1112 = vmatprep.subr.mxu0 0.0
        %1113 = vmatpush1.msra.mxu0 0.0
        %1114 = vmatprep.subr.mxu0 0.0
        %1115 = vmatpush1.msra.mxu0 0.0
        %1116 = vmatprep.subr.mxu0 0.0
        %1117 = vmatpush1.msra.mxu0 0.0
        %1118 = vmatprep.subr.mxu0 0.0
        %1119 = vmatpush1.msra.mxu0 0.0
        %1120 = vmatprep.subr.mxu0 0.0
        %1121 = vmatpush1.msra.mxu0 0.0
        %1122 = vmatprep.subr.mxu0 0.0
        %1123 = vmatpush1.msra.mxu0 0.0
        %1124 = vmatprep.subr.mxu0 0.0
        %1125 = vmatpush1.msra.mxu0 0.0
        %1126 = vmatprep.subr.mxu0 0.0
        %1127 = vmatpush1.msra.mxu0 0.0
        %1128 = vmatprep.subr.mxu0 0.0
        %1129 = vmatpush1.msra.mxu0 0.0
        %1130 = vmatprep.subr.mxu0 0.0
        %1131 = vmatpush1.msra.mxu0 0.0
        %1132 = vmatprep.subr.mxu0 0.0
        %1133 = vmatpush1.msra.mxu0 0.0
        %1134 = vmatprep.subr.mxu0 0.0
        %1135 = vmatpush1.msra.mxu0 0.0
        %1136 = vmatprep.subr.mxu0 0.0
        %1137 = vmatpush1.msra.mxu0 0.0
        %1138 = vmatprep.subr.mxu0 0.0
        %1139 = vmatpush1.msra.mxu0 0.0
        %1140 = vmatprep.subr.mxu0 0.0
        %1141 = vmatpush1.msra.mxu0 0.0
        %1142 = vmatprep.subr.mxu0 0.0
        %1143 = vmatpush1.msra.mxu0 0.0
        %1144 = vmatprep.subr.mxu0 0.0
        %1145 = vmatpush1.msra.mxu0 0.0
        %1146 = vmatprep.subr.mxu0 0.0
        %1147 = vmatpush1.msra.mxu0 0.0
        %1148 = vmatprep.subr.mxu0 0.0
        %1149 = vmatpush1.msra.mxu0 0.0
        %1150 = vmatprep.subr.mxu0 0.0
        %1151 = vmatpush1.msra.mxu0 0.0
        %1152 = vmatprep.subr.mxu0 0.0
        %1153 = vmatpush1.msra.mxu0 0.0
        %1154 = vmatprep.subr.mxu0 0.0
        %1155 = vmatpush1.msra.mxu0 0.0
        %1156 = vmatprep.subr.mxu0 0.0
        %1157 = vmatpush1.msra.mxu0 0.0
        %1158 = vmatprep.mubr.f32.mxu0 0.0
        %v1159 = vand.u32 %v829, 4294901760
        %v1160 = vsub.f32 %v829, %v1159
        %v1161 = vand.u32 %v1160, 4294901760
        %1162 = vmatmul.mubr.f32.gmra.mrb[0].mxu0 %v1161
        %v1163 = vpop.f32.mrb[0].mxu0
        %v1164 = vadd.f32 %v1086, %v1163
        %v1165 = vpop.f32.mrb[0].mxu0
        %1166 = vdwg.mxu0
        %1167 = vmatprep.subr.mxu0 0.0
        %v1168 = vand.u32 %v824, 4294901760
        %v1169 = vsub.f32 %v824, %v1168
        %v1170 = vand.u32 %v1169, 4294901760
        %1171 = vmatpush1.msra.mxu0 %v1170
        %1172 = vmatprep.subr.mxu0 0.0
        %v1173 = vand.u32 %v825, 4294901760
        %v1174 = vsub.f32 %v825, %v1173
        %v1175 = vand.u32 %v1174, 4294901760
        %1176 = vmatpush1.msra.mxu0 %v1175
        %1177 = vmatprep.subr.mxu0 0.0
        %v1178 = vand.u32 %v826, 4294901760
        %v1179 = vsub.f32 %v826, %v1178
        %v1180 = vand.u32 %v1179, 4294901760
        %1181 = vmatpush1.msra.mxu0 %v1180
        %1182 = vmatprep.subr.mxu0 0.0
        %v1183 = vand.u32 %v827, 4294901760
        %v1184 = vsub.f32 %v827, %v1183
        %v1185 = vand.u32 %v1184, 4294901760
        %1186 = vmatpush1.msra.mxu0 %v1185
        %1187 = vmatprep.subr.mxu0 0.0
        %v1188 = vand.u32 %v243, 4294901760
        %v1189 = vsub.f32 %v243, %v1188
        %v1190 = vand.u32 %v1189, 4294901760
        %1191 = vmatpush1.msra.mxu0 %v1190
        %1192 = vmatprep.subr.mxu0 0.0
        %1193 = vmatpush1.msra.mxu0 0.0
        %1194 = vmatprep.subr.mxu0 0.0
        %1195 = vmatpush1.msra.mxu0 0.0
        %1196 = vmatprep.subr.mxu0 0.0
        %1197 = vmatpush1.msra.mxu0 0.0
        %1198 = vmatprep.subr.mxu0 0.0
        %1199 = vmatpush1.msra.mxu0 0.0
        %1200 = vmatprep.subr.mxu0 0.0
        %1201 = vmatpush1.msra.mxu0 0.0
        %1202 = vmatprep.subr.mxu0 0.0
        %1203 = vmatpush1.msra.mxu0 0.0
        %1204 = vmatprep.subr.mxu0 0.0
        %1205 = vmatpush1.msra.mxu0 0.0
        %1206 = vmatprep.subr.mxu0 0.0
        %1207 = vmatpush1.msra.mxu0 0.0
        %1208 = vmatprep.subr.mxu0 0.0
        %1209 = vmatpush1.msra.mxu0 0.0
        %1210 = vmatprep.subr.mxu0 0.0
        %1211 = vmatpush1.msra.mxu0 0.0
        %1212 = vmatprep.subr.mxu0 0.0
        %1213 = vmatpush1.msra.mxu0 0.0
        %1214 = vmatprep.subr.mxu0 0.0
        %1215 = vmatpush1.msra.mxu0 0.0
        %1216 = vmatprep.subr.mxu0 0.0
        %1217 = vmatpush1.msra.mxu0 0.0
        %1218 = vmatprep.subr.mxu0 0.0
        %1219 = vmatpush1.msra.mxu0 0.0
        %1220 = vmatprep.subr.mxu0 0.0
        %1221 = vmatpush1.msra.mxu0 0.0
        %1222 = vmatprep.subr.mxu0 0.0
        %1223 = vmatpush1.msra.mxu0 0.0
        %1224 = vmatprep.subr.mxu0 0.0
        %1225 = vmatpush1.msra.mxu0 0.0
        %1226 = vmatprep.subr.mxu0 0.0
        %1227 = vmatpush1.msra.mxu0 0.0
        %1228 = vmatprep.subr.mxu0 0.0
        %1229 = vmatpush1.msra.mxu0 0.0
        %1230 = vmatprep.subr.mxu0 0.0
        %1231 = vmatpush1.msra.mxu0 0.0
        %1232 = vmatprep.subr.mxu0 0.0
        %1233 = vmatpush1.msra.mxu0 0.0
        %1234 = vmatprep.subr.mxu0 0.0
        %1235 = vmatpush1.msra.mxu0 0.0
        %1236 = vmatprep.subr.mxu0 0.0
        %1237 = vmatpush1.msra.mxu0 0.0
        %1238 = vmatprep.subr.mxu0 0.0
        %1239 = vmatpush1.msra.mxu0 0.0
        %1240 = vmatprep.subr.mxu0 0.0
        %1241 = vmatpush1.msra.mxu0 0.0
        %1242 = vmatprep.subr.mxu0 0.0
        %1243 = vmatpush1.msra.mxu0 0.0
        %1244 = vmatprep.subr.mxu0 0.0
        %1245 = vmatpush1.msra.mxu0 0.0
        %1246 = vmatprep.mubr.f32.mxu0 0.0
        %v1247 = vand.u32 %v829, 4294901760
        %1248 = vmatmul.mubr.f32.gmra.mrb[0].mxu0 %v1247
        %v1249 = vpop.f32.mrb[0].mxu0
        %v1250 = vadd.f32 %v1164, %v1249
        %v1251 = vpop.f32.mrb[0].mxu0
        %1252 = vdwg.mxu0
        %1253 = vmatprep.subr.mxu0 0.0
        %v1254 = vand.u32 %v824, 4294901760
        %1255 = vmatpush1.msra.mxu0 %v1254
        %1256 = vmatprep.subr.mxu0 0.0
        %v1257 = vand.u32 %v825, 4294901760
        %1258 = vmatpush1.msra.mxu0 %v1257
        %1259 = vmatprep.subr.mxu0 0.0
        %v1260 = vand.u32 %v826, 4294901760
        %1261 = vmatpush1.msra.mxu0 %v1260
        %1262 = vmatprep.subr.mxu0 0.0
        %v1263 = vand.u32 %v827, 4294901760
        %1264 = vmatpush1.msra.mxu0 %v1263
        %1265 = vmatprep.subr.mxu0 0.0
        %v1266 = vand.u32 %v243, 4294901760
        %1267 = vmatpush1.msra.mxu0 %v1266
        %1268 = vmatprep.subr.mxu0 0.0
        %1269 = vmatpush1.msra.mxu0 0.0
        %1270 = vmatprep.subr.mxu0 0.0
        %1271 = vmatpush1.msra.mxu0 0.0
        %1272 = vmatprep.subr.mxu0 0.0
        %1273 = vmatpush1.msra.mxu0 0.0
        %1274 = vmatprep.subr.mxu0 0.0
        %1275 = vmatpush1.msra.mxu0 0.0
        %1276 = vmatprep.subr.mxu0 0.0
        %1277 = vmatpush1.msra.mxu0 0.0
        %1278 = vmatprep.subr.mxu0 0.0
        %1279 = vmatpush1.msra.mxu0 0.0
        %1280 = vmatprep.subr.mxu0 0.0
        %1281 = vmatpush1.msra.mxu0 0.0
        %1282 = vmatprep.subr.mxu0 0.0
        %1283 = vmatpush1.msra.mxu0 0.0
        %1284 = vmatprep.subr.mxu0 0.0
        %1285 = vmatpush1.msra.mxu0 0.0
        %1286 = vmatprep.subr.mxu0 0.0
        %1287 = vmatpush1.msra.mxu0 0.0
        %1288 = vmatprep.subr.mxu0 0.0
        %1289 = vmatpush1.msra.mxu0 0.0
        %1290 = vmatprep.subr.mxu0 0.0
        %1291 = vmatpush1.msra.mxu0 0.0
        %1292 = vmatprep.subr.mxu0 0.0
        %1293 = vmatpush1.msra.mxu0 0.0
        %1294 = vmatprep.subr.mxu0 0.0
        %1295 = vmatpush1.msra.mxu0 0.0
        %1296 = vmatprep.subr.mxu0 0.0
        %1297 = vmatpush1.msra.mxu0 0.0
        %1298 = vmatprep.subr.mxu0 0.0
        %1299 = vmatpush1.msra.mxu0 0.0
        %1300 = vmatprep.subr.mxu0 0.0
        %1301 = vmatpush1.msra.mxu0 0.0
        %1302 = vmatprep.subr.mxu0 0.0
        %1303 = vmatpush1.msra.mxu0 0.0
        %1304 = vmatprep.subr.mxu0 0.0
        %1305 = vmatpush1.msra.mxu0 0.0
        %1306 = vmatprep.subr.mxu0 0.0
        %1307 = vmatpush1.msra.mxu0 0.0
        %1308 = vmatprep.subr.mxu0 0.0
        %1309 = vmatpush1.msra.mxu0 0.0
        %1310 = vmatprep.subr.mxu0 0.0
        %1311 = vmatpush1.msra.mxu0 0.0
        %1312 = vmatprep.subr.mxu0 0.0
        %1313 = vmatpush1.msra.mxu0 0.0
        %1314 = vmatprep.subr.mxu0 0.0
        %1315 = vmatpush1.msra.mxu0 0.0
        %1316 = vmatprep.subr.mxu0 0.0
        %1317 = vmatpush1.msra.mxu0 0.0
        %1318 = vmatprep.subr.mxu0 0.0
        %1319 = vmatpush1.msra.mxu0 0.0
        %1320 = vmatprep.subr.mxu0 0.0
        %1321 = vmatpush1.msra.mxu0 0.0
        %1322 = vmatprep.mubr.f32.mxu0 0.0
        %v1323 = vand.u32 %v829, 4294901760
        %1324 = vmatmul.mubr.f32.gmra.mrb[0].mxu0 %v1323
        %v1325 = vpop.f32.mrb[0].mxu0
        %v1326 = vadd.f32 %v1250, %v1325
        %v1327 = vpop.f32.mrb[0].mxu0
        %1328 = vdwg.mxu0
        %v1329 = vmax.f32 %v1326, 0.0
        %s1330 = scalar_lea.vmem %s1, 8
        %v1331 = vld [vmem:[%s1330] sm:$0xf]
        %1333 = vrot.lane.b32.xlu0 %v1329, 125
        %v1334 = vpop.permute.xlu0 %1333
        %1336 = vrot.lane.b32.xlu0 %v1329, 127
        %v1337 = vpop.permute.xlu0 %1336
        %1339 = vrot.lane.b32.xlu0 %v1329, 1
        %v1340 = vpop.permute.xlu0 %1339
        %1342 = vrot.lane.b32.xlu0 %v1329, 3
        %v1343 = vpop.permute.xlu0 %1342
        %1345 = vrot.lane.b32.xlu0 %v1329, 5
        %v1346 = vpop.permute.xlu0 %1345
        %1348 = vrot.lane.b32.xlu0 %v1329, 7
        %v1349 = vpop.permute.xlu0 %1348
        %1351 = vrot.lane.b32.xlu0 %v1329, 9
        %v1352 = vpop.permute.xlu0 %1351
        %1354 = vrot.lane.b32.xlu0 %v1329, 11
        %v1355 = vpop.permute.xlu0 %1354
        %v1357 = vsel %vm166, %v1334, %v1337
        %v1358 = vsel %vm168, %v1357, %v1340
        %v1359 = vsel %vm170, %v1358, %v1343
        %v1360 = vsel %vm170, %v1343, %v1346
        %v1361 = vsel %vm173, %v1360, %v1349
        %v1362 = vsel %vm175, %v1361, %v1352
        %v1363 = vsel %vm177, %v1362, %v1355
        %v1366 = vrot.slane %v1359, 4
        %v1367 = vrot.slane %v1363, 4
        %1368 = vrot.lane.b32.xlu0 %v1366, 127
        %v1369 = vpop.permute.xlu0 %1368
        %1370 = vrot.lane.b32.xlu0 %v1367, 127
        %v1371 = vpop.permute.xlu0 %1370
        %v1372 = vsel %vm187, %v1369, %v1371
        %1374 = vrot.lane.b32.xlu0 %v1359, 126
        %v1375 = vpop.permute.xlu0 %1374
        %1376 = vrot.lane.b32.xlu0 %v1363, 126
        %v1377 = vpop.permute.xlu0 %1376
        %v1378 = vsel %vm194, %v1375, %v1377
        %1380 = vrot.lane.b32.xlu0 %v1366, 125
        %v1381 = vpop.permute.xlu0 %1380
        %1382 = vrot.lane.b32.xlu0 %v1367, 125
        %v1383 = vpop.permute.xlu0 %1382
        %v1384 = vsel %vm201, %v1381, %v1383
        %1386 = vrot.lane.b32.xlu0 %v1359, 124
        %v1387 = vpop.permute.xlu0 %1386
        %1388 = vrot.lane.b32.xlu0 %v1363, 124
        %v1389 = vpop.permute.xlu0 %1388
        %v1390 = vsel %vm208, %v1387, %v1389
        %1392 = vrot.lane.b32.xlu0 %v1366, 123
        %v1393 = vpop.permute.xlu0 %1392
        %1394 = vrot.lane.b32.xlu0 %v1367, 123
        %v1395 = vpop.permute.xlu0 %1394
        %v1396 = vsel %vm215, %v1393, %v1395
        %1398 = vrot.lane.b32.xlu0 %v1359, 122
        %v1399 = vpop.permute.xlu0 %1398
        %1400 = vrot.lane.b32.xlu0 %v1363, 122
        %v1401 = vpop.permute.xlu0 %1400
        %v1402 = vsel %vm222, %v1399, %v1401
        %1404 = vrot.lane.b32.xlu0 %v1366, 121
        %v1405 = vpop.permute.xlu0 %1404
        %1406 = vrot.lane.b32.xlu0 %v1367, 121
        %v1407 = vpop.permute.xlu0 %1406
        %v1408 = vsel %vm229, %v1405, %v1407
        %v1410 = vsel %vm232, %v1359, %v1372
        %v1411 = vsel %vm232, %v1378, %v1384
        %v1412 = vsel %vm232, %v1390, %v1396
        %v1413 = vsel %vm232, %v1402, %v1408
        %v1415 = vsel %vm237, %v1331, 0
        %1417 = vmatprep.subr.mxu0 0.0
        %v1418 = vand.u32 %v1410, 4294901760
        %1419 = vmatpush1.msra.mxu0 %v1418
        %1420 = vmatprep.subr.mxu0 0.0
        %v1421 = vand.u32 %v1411, 4294901760
        %1422 = vmatpush1.msra.mxu0 %v1421
        %1423 = vmatprep.subr.mxu0 0.0
        %v1424 = vand.u32 %v1412, 4294901760
        %1425 = vmatpush1.msra.mxu0 %v1424
        %1426 = vmatprep.subr.mxu0 0.0
        %v1427 = vand.u32 %v1413, 4294901760
        %1428 = vmatpush1.msra.mxu0 %v1427
        %1429 = vmatprep.subr.mxu0 0.0
        %v1430 = vand.u32 %v243, 4294901760
        %1431 = vmatpush1.msra.mxu0 %v1430
        %1432 = vmatprep.subr.mxu0 0.0
        %1433 = vmatpush1.msra.mxu0 0.0
        %1434 = vmatprep.subr.mxu0 0.0
        %1435 = vmatpush1.msra.mxu0 0.0
        %1436 = vmatprep.subr.mxu0 0.0
        %1437 = vmatpush1.msra.mxu0 0.0
        %1438 = vmatprep.subr.mxu0 0.0
        %1439 = vmatpush1.msra.mxu0 0.0
        %1440 = vmatprep.subr.mxu0 0.0
        %1441 = vmatpush1.msra.mxu0 0.0
        %1442 = vmatprep.subr.mxu0 0.0
        %1443 = vmatpush1.msra.mxu0 0.0
        %1444 = vmatprep.subr.mxu0 0.0
        %1445 = vmatpush1.msra.mxu0 0.0
        %1446 = vmatprep.subr.mxu0 0.0
        %1447 = vmatpush1.msra.mxu0 0.0
        %1448 = vmatprep.subr.mxu0 0.0
        %1449 = vmatpush1.msra.mxu0 0.0
        %1450 = vmatprep.subr.mxu0 0.0
        %1451 = vmatpush1.msra.mxu0 0.0
        %1452 = vmatprep.subr.mxu0 0.0
        %1453 = vmatpush1.msra.mxu0 0.0
        %1454 = vmatprep.subr.mxu0 0.0
        %1455 = vmatpush1.msra.mxu0 0.0
        %1456 = vmatprep.subr.mxu0 0.0
        %1457 = vmatpush1.msra.mxu0 0.0
        %1458 = vmatprep.subr.mxu0 0.0
        %1459 = vmatpush1.msra.mxu0 0.0
        %1460 = vmatprep.subr.mxu0 0.0
        %1461 = vmatpush1.msra.mxu0 0.0
        %1462 = vmatprep.subr.mxu0 0.0
        %1463 = vmatpush1.msra.mxu0 0.0
        %1464 = vmatprep.subr.mxu0 0.0
        %1465 = vmatpush1.msra.mxu0 0.0
        %1466 = vmatprep.subr.mxu0 0.0
        %1467 = vmatpush1.msra.mxu0 0.0
        %1468 = vmatprep.subr.mxu0 0.0
        %1469 = vmatpush1.msra.mxu0 0.0
        %1470 = vmatprep.subr.mxu0 0.0
        %1471 = vmatpush1.msra.mxu0 0.0
        %1472 = vmatprep.subr.mxu0 0.0
        %1473 = vmatpush1.msra.mxu0 0.0
        %1474 = vmatprep.subr.mxu0 0.0
        %1475 = vmatpush1.msra.mxu0 0.0
        %1476 = vmatprep.subr.mxu0 0.0
        %1477 = vmatpush1.msra.mxu0 0.0
        %1478 = vmatprep.subr.mxu0 0.0
        %1479 = vmatpush1.msra.mxu0 0.0
        %1480 = vmatprep.subr.mxu0 0.0
        %1481 = vmatpush1.msra.mxu0 0.0
        %1482 = vmatprep.subr.mxu0 0.0
        %1483 = vmatpush1.msra.mxu0 0.0
        %1484 = vmatprep.subr.mxu0 0.0
        %1485 = vmatpush1.msra.mxu0 0.0
        %1486 = vmatprep.mubr.f32.mxu0 0.0
        %v1487 = vand.u32 %v1415, 4294901760
        %v1488 = vsub.f32 %v1415, %v1487
        %v1489 = vand.u32 %v1488, 4294901760
        %v1490 = vsub.f32 %v1488, %v1489
        %v1491 = vand.u32 %v1490, 4294901760
        %1492 = vmatmul.mubr.f32.gmra.mrb[0].mxu0 %v1491
        %v1493 = vpop.f32.mrb[0].mxu0
        %v1494 = vadd.f32 0.0, %v1493
        %v1495 = vpop.f32.mrb[0].mxu0
        %1496 = vdwg.mxu0
        %1497 = vmatprep.subr.mxu0 0.0
        %v1498 = vand.u32 %v1410, 4294901760
        %v1499 = vsub.f32 %v1410, %v1498
        %v1500 = vand.u32 %v1499, 4294901760
        %v1501 = vsub.f32 %v1499, %v1500
        %v1502 = vand.u32 %v1501, 4294901760
        %1503 = vmatpush1.msra.mxu0 %v1502
        %1504 = vmatprep.subr.mxu0 0.0
        %v1505 = vand.u32 %v1411, 4294901760
        %v1506 = vsub.f32 %v1411, %v1505
        %v1507 = vand.u32 %v1506, 4294901760
        %v1508 = vsub.f32 %v1506, %v1507
        %v1509 = vand.u32 %v1508, 4294901760
        %1510 = vmatpush1.msra.mxu0 %v1509
        %1511 = vmatprep.subr.mxu0 0.0
        %v1512 = vand.u32 %v1412, 4294901760
        %v1513 = vsub.f32 %v1412, %v1512
        %v1514 = vand.u32 %v1513, 4294901760
        %v1515 = vsub.f32 %v1513, %v1514
        %v1516 = vand.u32 %v1515, 4294901760
        %1517 = vmatpush1.msra.mxu0 %v1516
        %1518 = vmatprep.subr.mxu0 0.0
        %v1519 = vand.u32 %v1413, 4294901760
        %v1520 = vsub.f32 %v1413, %v1519
        %v1521 = vand.u32 %v1520, 4294901760
        %v1522 = vsub.f32 %v1520, %v1521
        %v1523 = vand.u32 %v1522, 4294901760
        %1524 = vmatpush1.msra.mxu0 %v1523
        %1525 = vmatprep.subr.mxu0 0.0
        %v1526 = vand.u32 %v243, 4294901760
        %v1527 = vsub.f32 %v243, %v1526
        %v1528 = vand.u32 %v1527, 4294901760
        %v1529 = vsub.f32 %v1527, %v1528
        %v1530 = vand.u32 %v1529, 4294901760
        %1531 = vmatpush1.msra.mxu0 %v1530
        %1532 = vmatprep.subr.mxu0 0.0
        %1533 = vmatpush1.msra.mxu0 0.0
        %1534 = vmatprep.subr.mxu0 0.0
        %1535 = vmatpush1.msra.mxu0 0.0
        %1536 = vmatprep.subr.mxu0 0.0
        %1537 = vmatpush1.msra.mxu0 0.0
        %1538 = vmatprep.subr.mxu0 0.0
        %1539 = vmatpush1.msra.mxu0 0.0
        %1540 = vmatprep.subr.mxu0 0.0
        %1541 = vmatpush1.msra.mxu0 0.0
        %1542 = vmatprep.subr.mxu0 0.0
        %1543 = vmatpush1.msra.mxu0 0.0
        %1544 = vmatprep.subr.mxu0 0.0
        %1545 = vmatpush1.msra.mxu0 0.0
        %1546 = vmatprep.subr.mxu0 0.0
        %1547 = vmatpush1.msra.mxu0 0.0
        %1548 = vmatprep.subr.mxu0 0.0
        %1549 = vmatpush1.msra.mxu0 0.0
        %1550 = vmatprep.subr.mxu0 0.0
        %1551 = vmatpush1.msra.mxu0 0.0
        %1552 = vmatprep.subr.mxu0 0.0
        %1553 = vmatpush1.msra.mxu0 0.0
        %1554 = vmatprep.subr.mxu0 0.0
        %1555 = vmatpush1.msra.mxu0 0.0
        %1556 = vmatprep.subr.mxu0 0.0
        %1557 = vmatpush1.msra.mxu0 0.0
        %1558 = vmatprep.subr.mxu0 0.0
        %1559 = vmatpush1.msra.mxu0 0.0
        %1560 = vmatprep.subr.mxu0 0.0
        %1561 = vmatpush1.msra.mxu0 0.0
        %1562 = vmatprep.subr.mxu0 0.0
        %1563 = vmatpush1.msra.mxu0 0.0
        %1564 = vmatprep.subr.mxu0 0.0
        %1565 = vmatpush1.msra.mxu0 0.0
        %1566 = vmatprep.subr.mxu0 0.0
        %1567 = vmatpush1.msra.mxu0 0.0
        %1568 = vmatprep.subr.mxu0 0.0
        %1569 = vmatpush1.msra.mxu0 0.0
        %1570 = vmatprep.subr.mxu0 0.0
        %1571 = vmatpush1.msra.mxu0 0.0
        %1572 = vmatprep.subr.mxu0 0.0
        %1573 = vmatpush1.msra.mxu0 0.0
        %1574 = vmatprep.subr.mxu0 0.0
        %1575 = vmatpush1.msra.mxu0 0.0
        %1576 = vmatprep.subr.mxu0 0.0
        %1577 = vmatpush1.msra.mxu0 0.0
        %1578 = vmatprep.subr.mxu0 0.0
        %1579 = vmatpush1.msra.mxu0 0.0
        %1580 = vmatprep.subr.mxu0 0.0
        %1581 = vmatpush1.msra.mxu0 0.0
        %1582 = vmatprep.subr.mxu0 0.0
        %1583 = vmatpush1.msra.mxu0 0.0
        %1584 = vmatprep.subr.mxu0 0.0
        %1585 = vmatpush1.msra.mxu0 0.0
        %1586 = vmatprep.mubr.f32.mxu0 0.0
        %v1587 = vand.u32 %v1415, 4294901760
        %1588 = vmatmul.mubr.f32.gmra.mrb[0].mxu0 %v1587
        %v1589 = vpop.f32.mrb[0].mxu0
        %v1590 = vadd.f32 %v1494, %v1589
        %v1591 = vpop.f32.mrb[0].mxu0
        %1592 = vdwg.mxu0
        %1593 = vmatprep.subr.mxu0 0.0
        %v1594 = vand.u32 %v1410, 4294901760
        %v1595 = vsub.f32 %v1410, %v1594
        %1596 = vmatpush1.msra.mxu0 %v1595
        %1597 = vmatprep.subr.mxu0 0.0
        %v1598 = vand.u32 %v1411, 4294901760
        %v1599 = vsub.f32 %v1411, %v1598
        %1600 = vmatpush1.msra.mxu0 %v1599
        %1601 = vmatprep.subr.mxu0 0.0
        %v1602 = vand.u32 %v1412, 4294901760
        %v1603 = vsub.f32 %v1412, %v1602
        %1604 = vmatpush1.msra.mxu0 %v1603
        %1605 = vmatprep.subr.mxu0 0.0
        %v1606 = vand.u32 %v1413, 4294901760
        %v1607 = vsub.f32 %v1413, %v1606
        %1608 = vmatpush1.msra.mxu0 %v1607
        %1609 = vmatprep.subr.mxu0 0.0
        %v1610 = vand.u32 %v243, 4294901760
        %v1611 = vsub.f32 %v243, %v1610
        %1612 = vmatpush1.msra.mxu0 %v1611
        %1613 = vmatprep.subr.mxu0 0.0
        %1614 = vmatpush1.msra.mxu0 0.0
        %1615 = vmatprep.subr.mxu0 0.0
        %1616 = vmatpush1.msra.mxu0 0.0
        %1617 = vmatprep.subr.mxu0 0.0
        %1618 = vmatpush1.msra.mxu0 0.0
        %1619 = vmatprep.subr.mxu0 0.0
        %1620 = vmatpush1.msra.mxu0 0.0
        %1621 = vmatprep.subr.mxu0 0.0
        %1622 = vmatpush1.msra.mxu0 0.0
        %1623 = vmatprep.subr.mxu0 0.0
        %1624 = vmatpush1.msra.mxu0 0.0
        %1625 = vmatprep.subr.mxu0 0.0
        %1626 = vmatpush1.msra.mxu0 0.0
        %1627 = vmatprep.subr.mxu0 0.0
        %1628 = vmatpush1.msra.mxu0 0.0
        %1629 = vmatprep.subr.mxu0 0.0
        %1630 = vmatpush1.msra.mxu0 0.0
        %1631 = vmatprep.subr.mxu0 0.0
        %1632 = vmatpush1.msra.mxu0 0.0
        %1633 = vmatprep.subr.mxu0 0.0
        %1634 = vmatpush1.msra.mxu0 0.0
        %1635 = vmatprep.subr.mxu0 0.0
        %1636 = vmatpush1.msra.mxu0 0.0
        %1637 = vmatprep.subr.mxu0 0.0
        %1638 = vmatpush1.msra.mxu0 0.0
        %1639 = vmatprep.subr.mxu0 0.0
        %1640 = vmatpush1.msra.mxu0 0.0
        %1641 = vmatprep.subr.mxu0 0.0
        %1642 = vmatpush1.msra.mxu0 0.0
        %1643 = vmatprep.subr.mxu0 0.0
        %1644 = vmatpush1.msra.mxu0 0.0
        %1645 = vmatprep.subr.mxu0 0.0
        %1646 = vmatpush1.msra.mxu0 0.0
        %1647 = vmatprep.subr.mxu0 0.0
        %1648 = vmatpush1.msra.mxu0 0.0
        %1649 = vmatprep.subr.mxu0 0.0
        %1650 = vmatpush1.msra.mxu0 0.0
        %1651 = vmatprep.subr.mxu0 0.0
        %1652 = vmatpush1.msra.mxu0 0.0
        %1653 = vmatprep.subr.mxu0 0.0
        %1654 = vmatpush1.msra.mxu0 0.0
        %1655 = vmatprep.subr.mxu0 0.0
        %1656 = vmatpush1.msra.mxu0 0.0
        %1657 = vmatprep.subr.mxu0 0.0
        %1658 = vmatpush1.msra.mxu0 0.0
        %1659 = vmatprep.subr.mxu0 0.0
        %1660 = vmatpush1.msra.mxu0 0.0
        %1661 = vmatprep.subr.mxu0 0.0
        %1662 = vmatpush1.msra.mxu0 0.0
        %1663 = vmatprep.subr.mxu0 0.0
        %1664 = vmatpush1.msra.mxu0 0.0
        %1665 = vmatprep.subr.mxu0 0.0
        %1666 = vmatpush1.msra.mxu0 0.0
        %1667 = vmatprep.mubr.f32.mxu0 0.0
        %v1668 = vand.u32 %v1415, 4294901760
        %v1669 = vsub.f32 %v1415, %v1668
        %1670 = vmatmul.mubr.f32.gmra.mrb[0].mxu0 %v1669
        %v1671 = vpop.f32.mrb[0].mxu0
        %v1672 = vadd.f32 %v1590, %v1671
        %v1673 = vpop.f32.mrb[0].mxu0
        %1674 = vdwg.mxu0
        %1675 = vmatprep.subr.mxu0 0.0
        %v1676 = vand.u32 %v1410, 4294901760
        %1677 = vmatpush1.msra.mxu0 %v1676
        %1678 = vmatprep.subr.mxu0 0.0
        %v1679 = vand.u32 %v1411, 4294901760
        %1680 = vmatpush1.msra.mxu0 %v1679
        %1681 = vmatprep.subr.mxu0 0.0
        %v1682 = vand.u32 %v1412, 4294901760
        %1683 = vmatpush1.msra.mxu0 %v1682
        %1684 = vmatprep.subr.mxu0 0.0
        %v1685 = vand.u32 %v1413, 4294901760
        %1686 = vmatpush1.msra.mxu0 %v1685
        %1687 = vmatprep.subr.mxu0 0.0
        %v1688 = vand.u32 %v243, 4294901760
        %1689 = vmatpush1.msra.mxu0 %v1688
        %1690 = vmatprep.subr.mxu0 0.0
        %1691 = vmatpush1.msra.mxu0 0.0
        %1692 = vmatprep.subr.mxu0 0.0
        %1693 = vmatpush1.msra.mxu0 0.0
        %1694 = vmatprep.subr.mxu0 0.0
        %1695 = vmatpush1.msra.mxu0 0.0
        %1696 = vmatprep.subr.mxu0 0.0
        %1697 = vmatpush1.msra.mxu0 0.0
        %1698 = vmatprep.subr.mxu0 0.0
        %1699 = vmatpush1.msra.mxu0 0.0
        %1700 = vmatprep.subr.mxu0 0.0
        %1701 = vmatpush1.msra.mxu0 0.0
        %1702 = vmatprep.subr.mxu0 0.0
        %1703 = vmatpush1.msra.mxu0 0.0
        %1704 = vmatprep.subr.mxu0 0.0
        %1705 = vmatpush1.msra.mxu0 0.0
        %1706 = vmatprep.subr.mxu0 0.0
        %1707 = vmatpush1.msra.mxu0 0.0
        %1708 = vmatprep.subr.mxu0 0.0
        %1709 = vmatpush1.msra.mxu0 0.0
        %1710 = vmatprep.subr.mxu0 0.0
        %1711 = vmatpush1.msra.mxu0 0.0
        %1712 = vmatprep.subr.mxu0 0.0
        %1713 = vmatpush1.msra.mxu0 0.0
        %1714 = vmatprep.subr.mxu0 0.0
        %1715 = vmatpush1.msra.mxu0 0.0
        %1716 = vmatprep.subr.mxu0 0.0
        %1717 = vmatpush1.msra.mxu0 0.0
        %1718 = vmatprep.subr.mxu0 0.0
        %1719 = vmatpush1.msra.mxu0 0.0
        %1720 = vmatprep.subr.mxu0 0.0
        %1721 = vmatpush1.msra.mxu0 0.0
        %1722 = vmatprep.subr.mxu0 0.0
        %1723 = vmatpush1.msra.mxu0 0.0
        %1724 = vmatprep.subr.mxu0 0.0
        %1725 = vmatpush1.msra.mxu0 0.0
        %1726 = vmatprep.subr.mxu0 0.0
        %1727 = vmatpush1.msra.mxu0 0.0
        %1728 = vmatprep.subr.mxu0 0.0
        %1729 = vmatpush1.msra.mxu0 0.0
        %1730 = vmatprep.subr.mxu0 0.0
        %1731 = vmatpush1.msra.mxu0 0.0
        %1732 = vmatprep.subr.mxu0 0.0
        %1733 = vmatpush1.msra.mxu0 0.0
        %1734 = vmatprep.subr.mxu0 0.0
        %1735 = vmatpush1.msra.mxu0 0.0
        %1736 = vmatprep.subr.mxu0 0.0
        %1737 = vmatpush1.msra.mxu0 0.0
        %1738 = vmatprep.subr.mxu0 0.0
        %1739 = vmatpush1.msra.mxu0 0.0
        %1740 = vmatprep.subr.mxu0 0.0
        %1741 = vmatpush1.msra.mxu0 0.0
        %1742 = vmatprep.subr.mxu0 0.0
        %1743 = vmatpush1.msra.mxu0 0.0
        %1744 = vmatprep.mubr.f32.mxu0 0.0
        %v1745 = vand.u32 %v1415, 4294901760
        %v1746 = vsub.f32 %v1415, %v1745
        %v1747 = vand.u32 %v1746, 4294901760
        %1748 = vmatmul.mubr.f32.gmra.mrb[0].mxu0 %v1747
        %v1749 = vpop.f32.mrb[0].mxu0
        %v1750 = vadd.f32 %v1672, %v1749
        %v1751 = vpop.f32.mrb[0].mxu0
        %1752 = vdwg.mxu0
        %1753 = vmatprep.subr.mxu0 0.0
        %v1754 = vand.u32 %v1410, 4294901760
        %v1755 = vsub.f32 %v1410, %v1754
        %v1756 = vand.u32 %v1755, 4294901760
        %1757 = vmatpush1.msra.mxu0 %v1756
        %1758 = vmatprep.subr.mxu0 0.0
        %v1759 = vand.u32 %v1411, 4294901760
        %v1760 = vsub.f32 %v1411, %v1759
        %v1761 = vand.u32 %v1760, 4294901760
        %1762 = vmatpush1.msra.mxu0 %v1761
        %1763 = vmatprep.subr.mxu0 0.0
        %v1764 = vand.u32 %v1412, 4294901760
        %v1765 = vsub.f32 %v1412, %v1764
        %v1766 = vand.u32 %v1765, 4294901760
        %1767 = vmatpush1.msra.mxu0 %v1766
        %1768 = vmatprep.subr.mxu0 0.0
        %v1769 = vand.u32 %v1413, 4294901760
        %v1770 = vsub.f32 %v1413, %v1769
        %v1771 = vand.u32 %v1770, 4294901760
        %1772 = vmatpush1.msra.mxu0 %v1771
        %1773 = vmatprep.subr.mxu0 0.0
        %v1774 = vand.u32 %v243, 4294901760
        %v1775 = vsub.f32 %v243, %v1774
        %v1776 = vand.u32 %v1775, 4294901760
        %1777 = vmatpush1.msra.mxu0 %v1776
        %1778 = vmatprep.subr.mxu0 0.0
        %1779 = vmatpush1.msra.mxu0 0.0
        %1780 = vmatprep.subr.mxu0 0.0
        %1781 = vmatpush1.msra.mxu0 0.0
        %1782 = vmatprep.subr.mxu0 0.0
        %1783 = vmatpush1.msra.mxu0 0.0
        %1784 = vmatprep.subr.mxu0 0.0
        %1785 = vmatpush1.msra.mxu0 0.0
        %1786 = vmatprep.subr.mxu0 0.0
        %1787 = vmatpush1.msra.mxu0 0.0
        %1788 = vmatprep.subr.mxu0 0.0
        %1789 = vmatpush1.msra.mxu0 0.0
        %1790 = vmatprep.subr.mxu0 0.0
        %1791 = vmatpush1.msra.mxu0 0.0
        %1792 = vmatprep.subr.mxu0 0.0
        %1793 = vmatpush1.msra.mxu0 0.0
        %1794 = vmatprep.subr.mxu0 0.0
        %1795 = vmatpush1.msra.mxu0 0.0
        %1796 = vmatprep.subr.mxu0 0.0
        %1797 = vmatpush1.msra.mxu0 0.0
        %1798 = vmatprep.subr.mxu0 0.0
        %1799 = vmatpush1.msra.mxu0 0.0
        %1800 = vmatprep.subr.mxu0 0.0
        %1801 = vmatpush1.msra.mxu0 0.0
        %1802 = vmatprep.subr.mxu0 0.0
        %1803 = vmatpush1.msra.mxu0 0.0
        %1804 = vmatprep.subr.mxu0 0.0
        %1805 = vmatpush1.msra.mxu0 0.0
        %1806 = vmatprep.subr.mxu0 0.0
        %1807 = vmatpush1.msra.mxu0 0.0
        %1808 = vmatprep.subr.mxu0 0.0
        %1809 = vmatpush1.msra.mxu0 0.0
        %1810 = vmatprep.subr.mxu0 0.0
        %1811 = vmatpush1.msra.mxu0 0.0
        %1812 = vmatprep.subr.mxu0 0.0
        %1813 = vmatpush1.msra.mxu0 0.0
        %1814 = vmatprep.subr.mxu0 0.0
        %1815 = vmatpush1.msra.mxu0 0.0
        %1816 = vmatprep.subr.mxu0 0.0
        %1817 = vmatpush1.msra.mxu0 0.0
        %1818 = vmatprep.subr.mxu0 0.0
        %1819 = vmatpush1.msra.mxu0 0.0
        %1820 = vmatprep.subr.mxu0 0.0
        %1821 = vmatpush1.msra.mxu0 0.0
        %1822 = vmatprep.subr.mxu0 0.0
        %1823 = vmatpush1.msra.mxu0 0.0
        %1824 = vmatprep.subr.mxu0 0.0
        %1825 = vmatpush1.msra.mxu0 0.0
        %1826 = vmatprep.subr.mxu0 0.0
        %1827 = vmatpush1.msra.mxu0 0.0
        %1828 = vmatprep.subr.mxu0 0.0
        %1829 = vmatpush1.msra.mxu0 0.0
        %1830 = vmatprep.subr.mxu0 0.0
        %1831 = vmatpush1.msra.mxu0 0.0
        %1832 = vmatprep.mubr.f32.mxu0 0.0
        %v1833 = vand.u32 %v1415, 4294901760
        %1834 = vmatmul.mubr.f32.gmra.mrb[0].mxu0 %v1833
        %v1835 = vpop.f32.mrb[0].mxu0
        %v1836 = vadd.f32 %v1750, %v1835
        %v1837 = vpop.f32.mrb[0].mxu0
        %1838 = vdwg.mxu0
        %1839 = vmatprep.subr.mxu0 0.0
        %v1840 = vand.u32 %v1410, 4294901760
        %1841 = vmatpush1.msra.mxu0 %v1840
        %1842 = vmatprep.subr.mxu0 0.0
        %v1843 = vand.u32 %v1411, 4294901760
        %1844 = vmatpush1.msra.mxu0 %v1843
        %1845 = vmatprep.subr.mxu0 0.0
        %v1846 = vand.u32 %v1412, 4294901760
        %1847 = vmatpush1.msra.mxu0 %v1846
        %1848 = vmatprep.subr.mxu0 0.0
        %v1849 = vand.u32 %v1413, 4294901760
        %1850 = vmatpush1.msra.mxu0 %v1849
        %1851 = vmatprep.subr.mxu0 0.0
        %v1852 = vand.u32 %v243, 4294901760
        %1853 = vmatpush1.msra.mxu0 %v1852
        %1854 = vmatprep.subr.mxu0 0.0
        %1855 = vmatpush1.msra.mxu0 0.0
        %1856 = vmatprep.subr.mxu0 0.0
        %1857 = vmatpush1.msra.mxu0 0.0
        %1858 = vmatprep.subr.mxu0 0.0
        %1859 = vmatpush1.msra.mxu0 0.0
        %1860 = vmatprep.subr.mxu0 0.0
        %1861 = vmatpush1.msra.mxu0 0.0
        %1862 = vmatprep.subr.mxu0 0.0
        %1863 = vmatpush1.msra.mxu0 0.0
        %1864 = vmatprep.subr.mxu0 0.0
        %1865 = vmatpush1.msra.mxu0 0.0
        %1866 = vmatprep.subr.mxu0 0.0
        %1867 = vmatpush1.msra.mxu0 0.0
        %1868 = vmatprep.subr.mxu0 0.0
        %1869 = vmatpush1.msra.mxu0 0.0
        %1870 = vmatprep.subr.mxu0 0.0
        %1871 = vmatpush1.msra.mxu0 0.0
        %1872 = vmatprep.subr.mxu0 0.0
        %1873 = vmatpush1.msra.mxu0 0.0
        %1874 = vmatprep.subr.mxu0 0.0
        %1875 = vmatpush1.msra.mxu0 0.0
        %1876 = vmatprep.subr.mxu0 0.0
        %1877 = vmatpush1.msra.mxu0 0.0
        %1878 = vmatprep.subr.mxu0 0.0
        %1879 = vmatpush1.msra.mxu0 0.0
        %1880 = vmatprep.subr.mxu0 0.0
        %1881 = vmatpush1.msra.mxu0 0.0
        %1882 = vmatprep.subr.mxu0 0.0
        %1883 = vmatpush1.msra.mxu0 0.0
        %1884 = vmatprep.subr.mxu0 0.0
        %1885 = vmatpush1.msra.mxu0 0.0
        %1886 = vmatprep.subr.mxu0 0.0
        %1887 = vmatpush1.msra.mxu0 0.0
        %1888 = vmatprep.subr.mxu0 0.0
        %1889 = vmatpush1.msra.mxu0 0.0
        %1890 = vmatprep.subr.mxu0 0.0
        %1891 = vmatpush1.msra.mxu0 0.0
        %1892 = vmatprep.subr.mxu0 0.0
        %1893 = vmatpush1.msra.mxu0 0.0
        %1894 = vmatprep.subr.mxu0 0.0
        %1895 = vmatpush1.msra.mxu0 0.0
        %1896 = vmatprep.subr.mxu0 0.0
        %1897 = vmatpush1.msra.mxu0 0.0
        %1898 = vmatprep.subr.mxu0 0.0
        %1899 = vmatpush1.msra.mxu0 0.0
        %1900 = vmatprep.subr.mxu0 0.0
        %1901 = vmatpush1.msra.mxu0 0.0
        %1902 = vmatprep.subr.mxu0 0.0
        %1903 = vmatpush1.msra.mxu0 0.0
        %1904 = vmatprep.subr.mxu0 0.0
        %1905 = vmatpush1.msra.mxu0 0.0
        %1906 = vmatprep.subr.mxu0 0.0
        %1907 = vmatpush1.msra.mxu0 0.0
        %1908 = vmatprep.mubr.f32.mxu0 0.0
        %v1909 = vand.u32 %v1415, 4294901760
        %1910 = vmatmul.mubr.f32.gmra.mrb[0].mxu0 %v1909
        %v1911 = vpop.f32.mrb[0].mxu0
        %v1912 = vadd.f32 %v1836, %v1911
        %v1913 = vpop.f32.mrb[0].mxu0
        %1914 = vdwg.mxu0
        %1915 = vst [vmem:[%s134] sm:$0xf] %v1912
        %s1916 = sand.u32 %s71, 1
        %s1917 = scalar_lea.sflag [#allocation3], %s1916
        %s1918 = sand.u32 %s71, 1
        %s1919 = smul.addr %s1918, 4
        %s1920 = scalar_lea.vmem [#allocation2], %s1919
        // Predicated region
        $region29: #{pure_conv_forward.1} parent=27 // pred_check
          %p1921 = pneg %p81
        $region30: #{pure_conv_forward.1} parent=27 // pred_check_branch
          %1923 = sbr.rel (%p1921) target = $region32
        $region31: #{pure_conv_forward.1} parent=27 // pred_region
          %s1925 = ssub.s32 64, 64
          %1926 = vsyncadd %s1917, %s1925
          %s1927 = smul.addr %s16, 64
          %s1928 = scalar_lea.hbm %s2, %s1927
          %s1930 = sshll.u32 %s1920, 4
          %s1931 = int_to_ptr.vmem [resolvable:$true] %s1930
          %1933 = dma.vmem_to_hbm [thread:$0]  %s1931, 64, %s1928, %s1917
        $region32: #{pure_conv_forward.1} parent=27 // pred_fallthru
          _
      $region28: #{pure_conv_forward.1} parent=5 // pred_fallthru
        _
      %p1934 = scmp.le.s32.totalorder 2, %s11
      // Predicated region
      $region33: #{pure_conv_forward.1} parent=5 // pred_check
        %p1935 = pneg %p1934
      $region34: #{pure_conv_forward.1} parent=5 // pred_check_branch
        %1937 = sbr.rel (%p1935) target = $region36
      $region35: #{pure_conv_forward.1} parent=5 // pred_region
        %s1938 = ssub.s32 %s11, 2
        // Predicated region
        $region37: #{pure_conv_forward.1} parent=35 // pred_check
          %p1939 = pneg %p87
        $region38: #{pure_conv_forward.1} parent=35 // pred_check_branch
          %1941 = sbr.rel (%p1939) target = $region40
        $region39: #{pure_conv_forward.1} parent=35 // pred_region
          %s1942 = sand.u32 %s72, 1
          %s1943 = scalar_lea.sflag [#allocation3], %s1942
          %s1944 = sand.u32 %s72, 1
          %s1945 = smul.addr %s1944, 4
          %s1946 = scalar_lea.vmem [#allocation2], %s1945
          %1947 = dma.done %s1943, 64
        $region40: #{pure_conv_forward.1} parent=35 // pred_fallthru
          _
      $region36: #{pure_conv_forward.1} parent=5 // pred_fallthru
        _
    $region6: #{pure_conv_forward.1} parent=1 // loop_footer
      %s15 = sadd.s32 1, %s11
    $region7: #{pure_conv_forward.1} parent=1 // loop_footer_branch
      %10 = sbr.rel target = $region3
    $region8: #{pure_conv_forward.1} parent=1 // loop_exit
      _
    %1948 = vsyncpa [#allocation3], 1
    %s1949 = scalar_lea.sflag [#allocation3], 1
    %1950 = vsyncpa %s1949, 1

</llo_original>
